<compile_context>
chip_gen: v7x
topology: tpu7x:2x2x1
jax: 0.10.0
libtpu: 0.0.40
codegen_flags: <defaults>
</compile_context>

<pallas_src>
import jax
import jax.numpy as jnp
import numpy as np
from jax.experimental import pallas as pl
from jax.experimental.pallas import tpu as pltpu


# ----------------------------------------------------------------------------
# Sparse.get_k — host-side scalar schedule (matches the torch module).
# ----------------------------------------------------------------------------
class Sparse:
    def __init__(self):
        self.last_k = 0.0

    def get_k(self, epoch, l0_norm):
        l0_norm_threshold, start, end = 40, 250, 500
        minimum, maximum = 0.0, 0.1
        if l0_norm <= l0_norm_threshold:
            return self.last_k
        if epoch < start:
            return minimum
        if epoch > end:
            return maximum
        return (epoch - start) * (maximum / (end - start))

    def threshold(self, epoch, l0_norm):
        self.last_k = self.get_k(epoch, l0_norm)
        return self.last_k


# ----------------------------------------------------------------------------
# Kernel 1: full-batch reductions (channel weights + BatchNorm statistics).
# Grid = (phase, batch_tile), both axes "arbitrary" (cross-tile accumulators).
# All reduction outputs have constant block indices -> stay resident in VMEM.
# ----------------------------------------------------------------------------
def zhang_stats_kernel(
    xT_ref,      # (BP, TM)  bf16   X^T tile: bands on sublanes, batch on lanes
    m_ref,       # (1, TM)   f32    column mask: 1/N on valid batch cols, 0 on padding
    w1_ref,      # (W, BP)   bf16   weighter Linear-1 weight (torch (out, in) layout)
    b1_ref,      # (W, 1)    f32
    w2_ref,      # (BP, W)   bf16   weighter Linear-2 weight (padded band rows are zero)
    b2_ref,      # (BP, 1)   f32
    k_ref,       # (1, 1)    f32    sparsity threshold
    c1_ref,      # (H, BP)   bf16   classnet Linear-1 weight
    cb1_ref,     # (H, 1)    f32
    cw_ref,      # out (BP, 1) f32  channel_weights = mean_batch |weighter(X)|
    sw_ref,      # out (BP, 1) f32  sparse_weights
    mu_ref,      # out (H, 1)  f32  BatchNorm batch mean
    rstd_ref,    # out (H, 1)  f32  1/sqrt(var+eps)  (holds E[h^2] while accumulating)
):
    p = pl.program_id(0)                 # 0 = weighter reduction, 1 = BN statistics
    t = pl.program_id(1)                 # batch tile
    last_t = pl.num_programs(1) - 1

    xT = xT_ref[...]                     # (BP, TM) bf16
    m = m_ref[...]                       # (1, TM)  f32  (already carries the 1/N factor)

    # ---- phase 0: channel_weights = mean_batch |W2 relu(W1 x + b1) + b2| + Sparse ----
    @pl.when(p == 0)
    def _weighter_phase():
        @pl.when(t == 0)
        def _init():
            cw_ref[...] = jnp.zeros_like(cw_ref)

        h = jnp.dot(w1_ref[...], xT, preferred_element_type=jnp.float32) + b1_ref[...]
        h = jnp.maximum(h, 0.0).astype(jnp.bfloat16)                        # (W, TM)
        cwt = jnp.dot(w2_ref[...], h, preferred_element_type=jnp.float32) + b2_ref[...]
        # mask carries 1/N -> accumulating masked sums yields the batch mean directly.
        cw_ref[...] += jnp.sum(jnp.abs(cwt) * m, axis=1, keepdims=True)     # (BP, 1)

        @pl.when(t == last_t)
        def _finalize():
            cw = cw_ref[...]             # already >= 0, torch's extra abs() is redundant
            sw_ref[...] = jnp.where(cw < k_ref[...], 0.0, cw)

    # ---- phase 1: BatchNorm1d(32) training-mode statistics of relu(C1 (x*sw) + cb1) ----
    @pl.when(p == 1)
    def _bn_stats_phase():
        @pl.when(t == 0)
        def _init():
            mu_ref[...] = jnp.zeros_like(mu_ref)
            rstd_ref[...] = jnp.zeros_like(rstd_ref)

        rwT = (xT.astype(jnp.float32) * sw_ref[...]).astype(jnp.bfloat16)   # (BP, TM)
        h2 = jnp.dot(c1_ref[...], rwT, preferred_element_type=jnp.float32) + cb1_ref[...]
        h2 = jnp.maximum(h2, 0.0)                                           # (H, TM) f32
        h2m = h2 * m
        mu_ref[...] += jnp.sum(h2m, axis=1, keepdims=True)                  # E[h2]
        rstd_ref[...] += jnp.sum(h2m * h2, axis=1, keepdims=True)           # E[h2^2]

        @pl.when(t == last_t)
        def _finalize():
            mu = mu_ref[...]
            var = jnp.maximum(rstd_ref[...] - mu * mu, 0.0)                 # biased variance
            rstd_ref[...] = jax.lax.rsqrt(var + 1e-5)


# ----------------------------------------------------------------------------
# Kernel 2: per-sample classnet apply.  Grid over batch tiles, "parallel"
# (independent tiles -> megacore split on v7x).  Output is a lane-dense (1, N)
# row; the Linear(32, 1) head is a VPU multiply + sublane reduce.
# ----------------------------------------------------------------------------
def zhang_apply_kernel(
    xT_ref,      # (BP, TM) bf16
    sw_ref,      # (BP, 1)  f32   sparse_weights
    c1_ref,      # (H, BP)  bf16
    cb1_ref,     # (H, 1)   f32
    g_ref,       # (H, 1)   f32   BN gamma
    b_ref,       # (H, 1)   f32   BN beta
    mu_ref,      # (H, 1)   f32
    rstd_ref,    # (H, 1)   f32
    c2_ref,      # (H, 1)   f32   classnet head weight (column)
    cb2_ref,     # (1, 1)   f32
    out_ref,     # out (1, TM) f32  lane-dense logits row
):
    xT = xT_ref[...]
    rwT = (xT.astype(jnp.float32) * sw_ref[...]).astype(jnp.bfloat16)       # (BP, TM)
    h2 = jnp.dot(c1_ref[...], rwT, preferred_element_type=jnp.float32) + cb1_ref[...]
    h2 = jnp.maximum(h2, 0.0)                                               # (H, TM)
    h2n = (h2 - mu_ref[...]) * rstd_ref[...] * g_ref[...] + b_ref[...]
    # Linear(32, 1): VPU multiply + cross-sublane reduce (no width-1 MXU matmul),
    # landing directly in a lane-dense (1, TM) row.
    prod = h2n * c2_ref[...]
    out_ref[...] = jnp.sum(prod, axis=0, keepdims=True) + cb2_ref[...]


# ----------------------------------------------------------------------------
# Wrapper: padding / layout plumbing + the two pallas_calls.
# ----------------------------------------------------------------------------
def _round_up(x, m):
    return ((x + m - 1) // m) * m


def _pad2(a, rows, cols, dtype):
    out = jnp.zeros((rows, cols), dtype)
    return out.at[: a.shape[0], : a.shape[1]].set(a.astype(dtype))


def zhangnet_forward(params, X, k):
    """X: (N, bands) f32; k: python float threshold.
    Returns (channel_weights (bands,), sparse_weights (bands,), output (N,))."""
    N, bands = X.shape
    f32, bf16 = jnp.float32, jnp.bfloat16
    Wh = params["w1_w"].shape[0]                   # 512 weighter hidden
    Hh = params["c1_w"].shape[0]                   # 32 classnet hidden

    # ---- layout / tiling ----------------------------------------------------
    BP = _round_up(bands, 128)                     # bands padded to a full lane width
    TM = min(512, _round_up(N, 8))                 # batch tile (lanes); 512 = 2x256 MXU dim,
    n_tiles = pl.cdiv(N, TM)                       # ~2 MiB/step -> safe for v7x 64 MiB VMEM
    N_pad = n_tiles * TM

    # ---- operands (bf16 matmul inputs, f32 elementwise path) ----------------
    xT = _pad2(X.T, BP, N_pad, bf16)                                   # (BP, N_pad)
    mask = jnp.where(jnp.arange(N_pad) < N, 1.0 / N, 0.0)
    mask = mask.astype(f32).reshape(1, N_pad)

    w1 = _pad2(params["w1_w"], Wh, BP, bf16)                           # (W, BP)
    b1 = params["w1_b"].reshape(Wh, 1).astype(f32)
    w2 = _pad2(params["w2_w"], BP, Wh, bf16)                           # (BP, W) zero pad rows
    b2 = _pad2(params["w2_b"].reshape(bands, 1), BP, 1, f32)           # zero on padded bands
    c1 = _pad2(params["c1_w"], Hh, BP, bf16)                           # (H, BP)
    cb1 = params["c1_b"].reshape(Hh, 1).astype(f32)
    gam = params["bn_w"].reshape(Hh, 1).astype(f32)
    bet = params["bn_b"].reshape(Hh, 1).astype(f32)
    c2 = params["c2_w"].reshape(Hh, 1).astype(f32)
    cb2 = params["c2_b"].reshape(1, 1).astype(f32)
    kthr = jnp.full((1, 1), k, f32)

    vmem_lim = 64 * 1024 * 1024   # explicit limit (<= v7x physical VMEM, 2x scoped default)

    # ---- pass 1+2: full-batch reductions (channel weights, BN stats) --------
    cost_stats = pl.CostEstimate(
        flops=int(4 * N_pad * BP * Wh + 2 * N_pad * BP * Hh),
        transcendentals=Hh,
        bytes_accessed=int(2 * BP * N_pad * 2 + 2 * Wh * BP * 2 + Hh * BP * 2
                           + 4 * (Wh + 3 * BP + 4 * Hh + N_pad + 2)),
    )
    cw_col, sw_col, mu_col, rstd_col = pl.pallas_call(
        zhang_stats_kernel,
        out_shape=(
            jax.ShapeDtypeStruct((BP, 1), f32),
            jax.ShapeDtypeStruct((BP, 1), f32),
            jax.ShapeDtypeStruct((Hh, 1), f32),
            jax.ShapeDtypeStruct((Hh, 1), f32),
        ),
        grid_spec=pltpu.PrefetchScalarGridSpec(
            num_scalar_prefetch=0,
            grid=(2, n_tiles),
            in_specs=[
                pl.BlockSpec((BP, TM), lambda p, t: (0, t)),   # X^T batch tile
                pl.BlockSpec((1, TM), lambda p, t: (0, t)),    # 1/N mask tile
                pl.BlockSpec((Wh, BP), lambda p, t: (0, 0)),   # weights stay resident
                pl.BlockSpec((Wh, 1), lambda p, t: (0, 0)),
                pl.BlockSpec((BP, Wh), lambda p, t: (0, 0)),
                pl.BlockSpec((BP, 1), lambda p, t: (0, 0)),
                pl.BlockSpec((1, 1), lambda p, t: (0, 0)),
                pl.BlockSpec((Hh, BP), lambda p, t: (0, 0)),
                pl.BlockSpec((Hh, 1), lambda p, t: (0, 0)),
            ],
            out_specs=(
                pl.BlockSpec((BP, 1), lambda p, t: (0, 0)),
                pl.BlockSpec((BP, 1), lambda p, t: (0, 0)),
                pl.BlockSpec((Hh, 1), lambda p, t: (0, 0)),
                pl.BlockSpec((Hh, 1), lambda p, t: (0, 0)),
            ),
        ),
        compiler_params=pltpu.CompilerParams(
            dimension_semantics=("arbitrary", "arbitrary"),   # cross-tile accumulators
            vmem_limit_bytes=vmem_lim,
        ),
        cost_estimate=cost_stats,
    )(xT, mask, w1, b1, w2, b2, kthr, c1, cb1)

    # ---- pass 3: per-sample classnet apply ("parallel" -> v7x megacore) -----
    cost_apply = pl.CostEstimate(
        flops=int(2 * N_pad * BP * Hh + 8 * N_pad * Hh),
        transcendentals=0,
        bytes_accessed=int(BP * N_pad * 2 + Hh * BP * 2 + 4 * (N_pad + BP + 6 * Hh + 2)),
    )
    out_row = pl.pallas_call(
        zhang_apply_kernel,
        out_shape=jax.ShapeDtypeStruct((1, N_pad), f32),
        grid_spec=pltpu.PrefetchScalarGridSpec(
            num_scalar_prefetch=0,
            grid=(n_tiles,),
            in_specs=[
                pl.BlockSpec((BP, TM), lambda t: (0, t)),
                pl.BlockSpec((BP, 1), lambda t: (0, 0)),
                pl.BlockSpec((Hh, BP), lambda t: (0, 0)),
                pl.BlockSpec((Hh, 1), lambda t: (0, 0)),
                pl.BlockSpec((Hh, 1), lambda t: (0, 0)),
                pl.BlockSpec((Hh, 1), lambda t: (0, 0)),
                pl.BlockSpec((Hh, 1), lambda t: (0, 0)),
                pl.BlockSpec((Hh, 1), lambda t: (0, 0)),
                pl.BlockSpec((Hh, 1), lambda t: (0, 0)),
                pl.BlockSpec((1, 1), lambda t: (0, 0)),
            ],
            out_specs=pl.BlockSpec((1, TM), lambda t: (0, t)),
        ),
        compiler_params=pltpu.CompilerParams(
            dimension_semantics=("parallel",),
            vmem_limit_bytes=vmem_lim,
        ),
        cost_estimate=cost_apply,
    )(xT, sw_col, c1, cb1, gam, bet, mu_col, rstd_col, c2, cb2)

    channel_weights = cw_col[:bands, 0]
    sparse_weights = sw_col[:bands, 0]
    output = out_row[0, :N]
    return channel_weights, sparse_weights, output


# ----------------------------------------------------------------------------
# Pure-JAX reference (same bf16 matmul-input precision as the kernel).
# ----------------------------------------------------------------------------
def reference_forward(params, X, k):
    f32, bf16 = jnp.float32, jnp.bfloat16
    xb = X.astype(bf16)
    h = jnp.dot(xb, params["w1_w"].astype(bf16).T, preferred_element_type=f32) + params["w1_b"]
    h = jnp.maximum(h, 0.0).astype(bf16)
    cwt = jnp.dot(h, params["w2_w"].astype(bf16).T, preferred_element_type=f32) + params["w2_b"]
    cw = jnp.mean(jnp.abs(cwt), axis=0)
    sw = jnp.where(cw < k, 0.0, cw)
    rw = (xb.astype(f32) * sw).astype(bf16)
    h2 = jnp.dot(rw, params["c1_w"].astype(bf16).T, preferred_element_type=f32) + params["c1_b"]
    h2 = jnp.maximum(h2, 0.0)
    mu = jnp.mean(h2, axis=0)
    var = jnp.maximum(jnp.mean(h2 * h2, axis=0) - mu * mu, 0.0)
    h2n = (h2 - mu) * jax.lax.rsqrt(var + 1e-5) * params["bn_w"] + params["bn_b"]
    out = jnp.sum(h2n * params["c2_w"].reshape(-1), axis=-1) + params["c2_b"][0]
    return cw, sw, out


# ----------------------------------------------------------------------------
# PyTorch-default init (uniform +/- 1/sqrt(fan_in)), torch (out, in) weight layout.
# ----------------------------------------------------------------------------
def init_params(bands, key):
    def linear(key, fan_in, fan_out):
        kw, kb = jax.random.split(key)
        bound = 1.0 / float(np.sqrt(fan_in))
        w = jax.random.uniform(kw, (fan_out, fan_in), jnp.float32, -bound, bound)
        b = jax.random.uniform(kb, (fan_out,), jnp.float32, -bound, bound)
        return w, b

    k1, k2, k3, k4 = jax.random.split(key, 4)
    w1_w, w1_b = linear(k1, bands, 512)
    w2_w, w2_b = linear(k2, 512, bands)
    c1_w, c1_b = linear(k3, bands, 32)
    c2_w, c2_b = linear(k4, 32, 1)
    return {
        "w1_w": w1_w, "w1_b": w1_b,
        "w2_w": w2_w, "w2_b": w2_b,
        "c1_w": c1_w, "c1_b": c1_b,
        "bn_w": jnp.ones((32,), jnp.float32),
        "bn_b": jnp.zeros((32,), jnp.float32),
        "c2_w": c2_w, "c2_b": c2_b,
    }


if __name__ == "__main__":
    bands = 32
    N = 8

    key = jax.random.PRNGKey(0)
    kx, kp = jax.random.split(key)
    X = jax.random.normal(kx, (N, bands), dtype=jnp.float32)
    params = init_params(bands, kp)

    sparse = Sparse()
    k = float(sparse.threshold(epoch=300, l0_norm=50))   # linear-ramp branch -> k = 0.02

    cw, sw, out = zhangnet_forward(params, X, k)
    jax.block_until_ready((cw, sw, out))

    assert cw.shape == (bands,) and sw.shape == (bands,) and out.shape == (N,)

    cw_r, sw_r, out_r = reference_forward(params, X, k)
    np.testing.assert_allclose(np.asarray(cw), np.asarray(cw_r), rtol=2e-2, atol=2e-2)
    np.testing.assert_allclose(np.asarray(sw), np.asarray(sw_r), rtol=2e-2, atol=2e-2)
    np.testing.assert_allclose(np.asarray(out), np.asarray(out_r), rtol=2e-2, atol=2e-2)

    print("KERNEL_OK")
</pallas_src>

<mosaic_0001>
module attributes {stable_mosaic.version = 11 : i64} {
  func.func @zhang_stats_kernel(%arg0: i32, %arg1: i32, %arg2: memref<128x8xbf16, #tpu.memory_space<vmem>>, %arg3: memref<1x8xf32, #tpu.memory_space<vmem>>, %arg4: memref<512x128xbf16, #tpu.memory_space<vmem>>, %arg5: memref<512x1xf32, #tpu.memory_space<vmem>>, %arg6: memref<128x512xbf16, #tpu.memory_space<vmem>>, %arg7: memref<128x1xf32, #tpu.memory_space<vmem>>, %arg8: memref<1x1xf32, #tpu.memory_space<vmem>>, %arg9: memref<32x128xbf16, #tpu.memory_space<vmem>>, %arg10: memref<32x1xf32, #tpu.memory_space<vmem>>, %arg11: memref<128x1xf32, #tpu.memory_space<vmem>>, %arg12: memref<128x1xf32, #tpu.memory_space<vmem>>, %arg13: memref<32x1xf32, #tpu.memory_space<vmem>>, %arg14: memref<32x1xf32, #tpu.memory_space<vmem>>) attributes {dimension_semantics = [#tpu.dimension_semantics<arbitrary>, #tpu.dimension_semantics<arbitrary>], iteration_bounds = array<i64: 2, 1>, scalar_prefetch = 0 : i64, scratch_operands = 0 : i64, tpu.core_type = #tpu.core_type<tc>, window_params = [{transform_indices = @transform_0, window_bounds = array<i64: 128, 8>}, {transform_indices = @transform_1, window_bounds = array<i64: 1, 8>}, {pipeline_mode = #tpu.pipeline_mode<synchronous>, transform_indices = @transform_2, window_bounds = array<i64: 512, 128>}, {pipeline_mode = #tpu.pipeline_mode<synchronous>, transform_indices = @transform_3, window_bounds = array<i64: 512, 1>}, {pipeline_mode = #tpu.pipeline_mode<synchronous>, transform_indices = @transform_4, window_bounds = array<i64: 128, 512>}, {pipeline_mode = #tpu.pipeline_mode<synchronous>, transform_indices = @transform_5, window_bounds = array<i64: 128, 1>}, {pipeline_mode = #tpu.pipeline_mode<synchronous>, transform_indices = @transform_6, window_bounds = array<i64: 1, 1>}, {pipeline_mode = #tpu.pipeline_mode<synchronous>, transform_indices = @transform_7, window_bounds = array<i64: 32, 128>}, {pipeline_mode = #tpu.pipeline_mode<synchronous>, transform_indices = @transform_8, window_bounds = array<i64: 32, 1>}, {pipeline_mode = #tpu.pipeline_mode<synchronous>, transform_indices = @transform_9, window_bounds = array<i64: 128, 1>}, {pipeline_mode = #tpu.pipeline_mode<synchronous>, transform_indices = @transform_10, window_bounds = array<i64: 128, 1>}, {pipeline_mode = #tpu.pipeline_mode<synchronous>, transform_indices = @transform_11, window_bounds = array<i64: 32, 1>}, {pipeline_mode = #tpu.pipeline_mode<synchronous>, transform_indices = @transform_12, window_bounds = array<i64: 32, 1>}]} {
    %c0 = arith.constant 0 : index
    %c0_0 = arith.constant 0 : index
    %0 = vector.load %arg2[%c0, %c0_0] : memref<128x8xbf16, #tpu.memory_space<vmem>>, vector<128x8xbf16>
    %c0_1 = arith.constant 0 : index
    %c0_2 = arith.constant 0 : index
    %1 = vector.load %arg3[%c0_1, %c0_2] : memref<1x8xf32, #tpu.memory_space<vmem>>, vector<1x8xf32>
    %c0_i32 = arith.constant 0 : i32
    %2 = arith.cmpi eq, %arg0, %c0_i32 : i32
    %3 = arith.extui %2 : i1 to i32
    %c0_i32_3 = arith.constant 0 : i32
    %4 = arith.cmpi ne, %3, %c0_i32_3 : i32
    scf.if %4 {
      %c0_i32_5 = arith.constant 0 : i32
      %8 = arith.cmpi eq, %arg1, %c0_i32_5 : i32
      %9 = arith.extui %8 : i1 to i32
      %c0_i32_6 = arith.constant 0 : i32
      %10 = arith.cmpi ne, %9, %c0_i32_6 : i32
      scf.if %10 {
        %cst_24 = arith.constant 0.000000e+00 : f32
        %35 = vector.broadcast %cst_24 : f32 to vector<128x1xf32>
        %c0_25 = arith.constant 0 : index
        %c0_26 = arith.constant 0 : index
        %36 = vector.load %arg11[%c0_25, %c0_26] : memref<128x1xf32, #tpu.memory_space<vmem>>, vector<128x1xf32>
        tpu.vector_store %arg11[%c0_25, %c0_26], %35 {strides = array<i32>} : memref<128x1xf32, #tpu.memory_space<vmem>>, vector<128x1xf32>,
      } else {
      }
      %c0_7 = arith.constant 0 : index
      %c0_8 = arith.constant 0 : index
      %11 = vector.load %arg4[%c0_7, %c0_8] : memref<512x128xbf16, #tpu.memory_space<vmem>>, vector<512x128xbf16>
      %cst = arith.constant dense<0.000000e+00> : vector<512x8xf32>
      %12 = tpu.matmul %11, %0, %cst {dimension_numbers = #tpu.dot_dimension_numbers<[1], [0], [0], [1], [0, 0, 1, 1], [], []>} : vector<512x128xbf16>, vector<128x8xbf16>, vector<512x8xf32> -> vector<512x8xf32>
      %c0_9 = arith.constant 0 : index
      %c0_10 = arith.constant 0 : index
      %13 = vector.load %arg5[%c0_9, %c0_10] : memref<512x1xf32, #tpu.memory_space<vmem>>, vector<512x1xf32>
      %14 = vector.broadcast %13 : vector<512x1xf32> to vector<512x8xf32>
      %15 = arith.addf %12, %14 : vector<512x8xf32>
      %cst_11 = arith.constant 0.000000e+00 : f32
      %16 = vector.broadcast %cst_11 : f32 to vector<512x8xf32>
      %17 = arith.maximumf %15, %16 : vector<512x8xf32>
      %18 = arith.truncf %17 : vector<512x8xf32> to vector<512x8xbf16>
      %c0_12 = arith.constant 0 : index
      %c0_13 = arith.constant 0 : index
      %19 = vector.load %arg6[%c0_12, %c0_13] : memref<128x512xbf16, #tpu.memory_space<vmem>>, vector<128x512xbf16>
      %cst_14 = arith.constant dense<0.000000e+00> : vector<128x8xf32>
      %20 = tpu.matmul %19, %18, %cst_14 {dimension_numbers = #tpu.dot_dimension_numbers<[1], [0], [0], [1], [0, 0, 1, 1], [], []>} : vector<128x512xbf16>, vector<512x8xbf16>, vector<128x8xf32> -> vector<128x8xf32>
      %c0_15 = arith.constant 0 : index
      %c0_16 = arith.constant 0 : index
      %21 = vector.load %arg7[%c0_15, %c0_16] : memref<128x1xf32, #tpu.memory_space<vmem>>, vector<128x1xf32>
      %22 = vector.broadcast %21 : vector<128x1xf32> to vector<128x8xf32>
      %23 = arith.addf %20, %22 : vector<128x8xf32>
      %c0_17 = arith.constant 0 : index
      %c0_18 = arith.constant 0 : index
      %24 = vector.load %arg11[%c0_17, %c0_18] : memref<128x1xf32, #tpu.memory_space<vmem>>, vector<128x1xf32>
      %25 = math.absf %23 : vector<128x8xf32>
      %26 = vector.broadcast %1 : vector<1x8xf32> to vector<128x8xf32>
      %27 = arith.mulf %25, %26 : vector<128x8xf32>
      %cst_19 = arith.constant dense<0.000000e+00> : vector<128xf32>
      %28 = vector.multi_reduction <add>, %27, %cst_19 [1] : vector<128x8xf32> to vector<128xf32>
      %29 = vector.shape_cast %28 : vector<128xf32> to vector<128x1xf32>
      %30 = arith.addf %24, %29 : vector<128x1xf32>
      %c0_20 = arith.constant 0 : index
      %c0_21 = arith.constant 0 : index
      %31 = vector.load %arg11[%c0_20, %c0_21] : memref<128x1xf32, #tpu.memory_space<vmem>>, vector<128x1xf32>
      tpu.vector_store %arg11[%c0_20, %c0_21], %30 {strides = array<i32>} : memref<128x1xf32, #tpu.memory_space<vmem>>, vector<128x1xf32>,
      %c0_i32_22 = arith.constant 0 : i32
      %32 = arith.cmpi eq, %arg1, %c0_i32_22 : i32
      %33 = arith.extui %32 : i1 to i32
      %c0_i32_23 = arith.constant 0 : i32
      %34 = arith.cmpi ne, %33, %c0_i32_23 : i32
      scf.if %34 {
        %c0_24 = arith.constant 0 : index
        %c0_25 = arith.constant 0 : index
        %35 = vector.load %arg11[%c0_24, %c0_25] : memref<128x1xf32, #tpu.memory_space<vmem>>, vector<128x1xf32>
        %c0_26 = arith.constant 0 : index
        %c0_27 = arith.constant 0 : index
        %36 = vector.load %arg8[%c0_26, %c0_27] : memref<1x1xf32, #tpu.memory_space<vmem>>, vector<1x1xf32>
        %37 = vector.broadcast %36 : vector<1x1xf32> to vector<128x1xf32>
        %38 = arith.cmpf olt, %35, %37 : vector<128x1xf32>
        %cst_28 = arith.constant 0.000000e+00 : f32
        %39 = vector.broadcast %cst_28 : f32 to vector<128x1xf32>
        %40 = arith.select %38, %39, %35 : vector<128x1xi1>, vector<128x1xf32>
        %c0_29 = arith.constant 0 : index
        %c0_30 = arith.constant 0 : index
        %41 = vector.load %arg12[%c0_29, %c0_30] : memref<128x1xf32, #tpu.memory_space<vmem>>, vector<128x1xf32>
        tpu.vector_store %arg12[%c0_29, %c0_30], %40 {strides = array<i32>} : memref<128x1xf32, #tpu.memory_space<vmem>>, vector<128x1xf32>,
      } else {
      }
    } else {
    }
    %c1_i32 = arith.constant 1 : i32
    %5 = arith.cmpi eq, %arg0, %c1_i32 : i32
    %6 = arith.extui %5 : i1 to i32
    %c0_i32_4 = arith.constant 0 : i32
    %7 = arith.cmpi ne, %6, %c0_i32_4 : i32
    scf.if %7 {
      %c0_i32_5 = arith.constant 0 : i32
      %8 = arith.cmpi eq, %arg1, %c0_i32_5 : i32
      %9 = arith.extui %8 : i1 to i32
      %c0_i32_6 = arith.constant 0 : i32
      %10 = arith.cmpi ne, %9, %c0_i32_6 : i32
      scf.if %10 {
        %cst_26 = arith.constant 0.000000e+00 : f32
        %39 = vector.broadcast %cst_26 : f32 to vector<32x1xf32>
        %c0_27 = arith.constant 0 : index
        %c0_28 = arith.constant 0 : index
        %40 = vector.load %arg13[%c0_27, %c0_28] : memref<32x1xf32, #tpu.memory_space<vmem>>, vector<32x1xf32>
        tpu.vector_store %arg13[%c0_27, %c0_28], %39 {strides = array<i32>} : memref<32x1xf32, #tpu.memory_space<vmem>>, vector<32x1xf32>,
        %cst_29 = arith.constant 0.000000e+00 : f32
        %41 = vector.broadcast %cst_29 : f32 to vector<32x1xf32>
        %c0_30 = arith.constant 0 : index
        %c0_31 = arith.constant 0 : index
        %42 = vector.load %arg14[%c0_30, %c0_31] : memref<32x1xf32, #tpu.memory_space<vmem>>, vector<32x1xf32>
        tpu.vector_store %arg14[%c0_30, %c0_31], %41 {strides = array<i32>} : memref<32x1xf32, #tpu.memory_space<vmem>>, vector<32x1xf32>,
      } else {
      }
      %11 = arith.extf %0 : vector<128x8xbf16> to vector<128x8xf32>
      %c0_7 = arith.constant 0 : index
      %c0_8 = arith.constant 0 : index
      %12 = vector.load %arg12[%c0_7, %c0_8] : memref<128x1xf32, #tpu.memory_space<vmem>>, vector<128x1xf32>
      %13 = vector.broadcast %12 : vector<128x1xf32> to vector<128x8xf32>
      %14 = arith.mulf %11, %13 : vector<128x8xf32>
      %15 = arith.truncf %14 : vector<128x8xf32> to vector<128x8xbf16>
      %c0_9 = arith.constant 0 : index
      %c0_10 = arith.constant 0 : index
      %16 = vector.load %arg9[%c0_9, %c0_10] : memref<32x128xbf16, #tpu.memory_space<vmem>>, vector<32x128xbf16>
      %cst = arith.constant dense<0.000000e+00> : vector<32x8xf32>
      %17 = tpu.matmul %16, %15, %cst {dimension_numbers = #tpu.dot_dimension_numbers<[1], [0], [0], [1], [0, 0, 1, 1], [], []>} : vector<32x128xbf16>, vector<128x8xbf16>, vector<32x8xf32> -> vector<32x8xf32>
      %c0_11 = arith.constant 0 : index
      %c0_12 = arith.constant 0 : index
      %18 = vector.load %arg10[%c0_11, %c0_12] : memref<32x1xf32, #tpu.memory_space<vmem>>, vector<32x1xf32>
      %19 = vector.broadcast %18 : vector<32x1xf32> to vector<32x8xf32>
      %20 = arith.addf %17, %19 : vector<32x8xf32>
      %cst_13 = arith.constant 0.000000e+00 : f32
      %21 = vector.broadcast %cst_13 : f32 to vector<32x8xf32>
      %22 = arith.maximumf %20, %21 : vector<32x8xf32>
      %23 = vector.broadcast %1 : vector<1x8xf32> to vector<32x8xf32>
      %24 = arith.mulf %22, %23 : vector<32x8xf32>
      %c0_14 = arith.constant 0 : index
      %c0_15 = arith.constant 0 : index
      %25 = vector.load %arg13[%c0_14, %c0_15] : memref<32x1xf32, #tpu.memory_space<vmem>>, vector<32x1xf32>
      %cst_16 = arith.constant dense<0.000000e+00> : vector<32xf32>
      %26 = vector.multi_reduction <add>, %24, %cst_16 [1] : vector<32x8xf32> to vector<32xf32>
      %27 = vector.shape_cast %26 : vector<32xf32> to vector<32x1xf32>
      %28 = arith.addf %25, %27 : vector<32x1xf32>
      %c0_17 = arith.constant 0 : index
      %c0_18 = arith.constant 0 : index
      %29 = vector.load %arg13[%c0_17, %c0_18] : memref<32x1xf32, #tpu.memory_space<vmem>>, vector<32x1xf32>
      tpu.vector_store %arg13[%c0_17, %c0_18], %28 {strides = array<i32>} : memref<32x1xf32, #tpu.memory_space<vmem>>, vector<32x1xf32>,
      %c0_19 = arith.constant 0 : index
      %c0_20 = arith.constant 0 : index
      %30 = vector.load %arg14[%c0_19, %c0_20] : memref<32x1xf32, #tpu.memory_space<vmem>>, vector<32x1xf32>
      %31 = arith.mulf %24, %22 : vector<32x8xf32>
      %cst_21 = arith.constant dense<0.000000e+00> : vector<32xf32>
      %32 = vector.multi_reduction <add>, %31, %cst_21 [1] : vector<32x8xf32> to vector<32xf32>
      %33 = vector.shape_cast %32 : vector<32xf32> to vector<32x1xf32>
      %34 = arith.addf %30, %33 : vector<32x1xf32>
      %c0_22 = arith.constant 0 : index
      %c0_23 = arith.constant 0 : index
      %35 = vector.load %arg14[%c0_22, %c0_23] : memref<32x1xf32, #tpu.memory_space<vmem>>, vector<32x1xf32>
      tpu.vector_store %arg14[%c0_22, %c0_23], %34 {strides = array<i32>} : memref<32x1xf32, #tpu.memory_space<vmem>>, vector<32x1xf32>,
      %c0_i32_24 = arith.constant 0 : i32
      %36 = arith.cmpi eq, %arg1, %c0_i32_24 : i32
      %37 = arith.extui %36 : i1 to i32
      %c0_i32_25 = arith.constant 0 : i32
      %38 = arith.cmpi ne, %37, %c0_i32_25 : i32
      scf.if %38 {
        %c0_26 = arith.constant 0 : index
        %c0_27 = arith.constant 0 : index
        %39 = vector.load %arg13[%c0_26, %c0_27] : memref<32x1xf32, #tpu.memory_space<vmem>>, vector<32x1xf32>
        %c0_28 = arith.constant 0 : index
        %c0_29 = arith.constant 0 : index
        %40 = vector.load %arg14[%c0_28, %c0_29] : memref<32x1xf32, #tpu.memory_space<vmem>>, vector<32x1xf32>
        %41 = arith.mulf %39, %39 : vector<32x1xf32>
        %42 = arith.subf %40, %41 : vector<32x1xf32>
        %cst_30 = arith.constant 0.000000e+00 : f32
        %43 = vector.broadcast %cst_30 : f32 to vector<32x1xf32>
        %44 = arith.maximumf %42, %43 : vector<32x1xf32>
        %cst_31 = arith.constant 9.99999974E-6 : f32
        %45 = vector.broadcast %cst_31 : f32 to vector<32x1xf32>
        %46 = arith.addf %44, %45 : vector<32x1xf32>
        %47 = math.rsqrt %46 : vector<32x1xf32>
        %c0_32 = arith.constant 0 : index
        %c0_33 = arith.constant 0 : index
        %48 = vector.load %arg14[%c0_32, %c0_33] : memref<32x1xf32, #tpu.memory_space<vmem>>, vector<32x1xf32>
        tpu.vector_store %arg14[%c0_32, %c0_33], %47 {strides = array<i32>} : memref<32x1xf32, #tpu.memory_space<vmem>>, vector<32x1xf32>,
      } else {
      }
    } else {
    }
    return
  }
  func.func @transform_0(%arg0: i32, %arg1: i32) -> (i32, i32) {
    %c0_i32 = arith.constant 0 : i32
    %c0_i32_0 = arith.constant 0 : i32
    return %c0_i32, %arg1 : i32, i32
  }
  func.func @transform_1(%arg0: i32, %arg1: i32) -> (i32, i32) {
    %c0_i32 = arith.constant 0 : i32
    %c0_i32_0 = arith.constant 0 : i32
    return %c0_i32, %arg1 : i32, i32
  }
  func.func @transform_2(%arg0: i32, %arg1: i32) -> (i32, i32) {
    %c0_i32 = arith.constant 0 : i32
    %c0_i32_0 = arith.constant 0 : i32
    %c0_i32_1 = arith.constant 0 : i32
    return %c0_i32, %c0_i32_0 : i32, i32
  }
  func.func @transform_3(%arg0: i32, %arg1: i32) -> (i32, i32) {
    %c0_i32 = arith.constant 0 : i32
    %c0_i32_0 = arith.constant 0 : i32
    %c0_i32_1 = arith.constant 0 : i32
    return %c0_i32, %c0_i32_0 : i32, i32
  }
  func.func @transform_4(%arg0: i32, %arg1: i32) -> (i32, i32) {
    %c0_i32 = arith.constant 0 : i32
    %c0_i32_0 = arith.constant 0 : i32
    %c0_i32_1 = arith.constant 0 : i32
    return %c0_i32, %c0_i32_0 : i32, i32
  }
  func.func @transform_5(%arg0: i32, %arg1: i32) -> (i32, i32) {
    %c0_i32 = arith.constant 0 : i32
    %c0_i32_0 = arith.constant 0 : i32
    %c0_i32_1 = arith.constant 0 : i32
    return %c0_i32, %c0_i32_0 : i32, i32
  }
  func.func @transform_6(%arg0: i32, %arg1: i32) -> (i32, i32) {
    %c0_i32 = arith.constant 0 : i32
    %c0_i32_0 = arith.constant 0 : i32
    %c0_i32_1 = arith.constant 0 : i32
    return %c0_i32, %c0_i32_0 : i32, i32
  }
  func.func @transform_7(%arg0: i32, %arg1: i32) -> (i32, i32) {
    %c0_i32 = arith.constant 0 : i32
    %c0_i32_0 = arith.constant 0 : i32
    %c0_i32_1 = arith.constant 0 : i32
    return %c0_i32, %c0_i32_0 : i32, i32
  }
  func.func @transform_8(%arg0: i32, %arg1: i32) -> (i32, i32) {
    %c0_i32 = arith.constant 0 : i32
    %c0_i32_0 = arith.constant 0 : i32
    %c0_i32_1 = arith.constant 0 : i32
    return %c0_i32, %c0_i32_0 : i32, i32
  }
  func.func @transform_9(%arg0: i32, %arg1: i32) -> (i32, i32) {
    %c0_i32 = arith.constant 0 : i32
    %c0_i32_0 = arith.constant 0 : i32
    %c0_i32_1 = arith.constant 0 : i32
    return %c0_i32, %c0_i32_0 : i32, i32
  }
  func.func @transform_10(%arg0: i32, %arg1: i32) -> (i32, i32) {
    %c0_i32 = arith.constant 0 : i32
    %c0_i32_0 = arith.constant 0 : i32
    %c0_i32_1 = arith.constant 0 : i32
    return %c0_i32, %c0_i32_0 : i32, i32
  }
  func.func @transform_11(%arg0: i32, %arg1: i32) -> (i32, i32) {
    %c0_i32 = arith.constant 0 : i32
    %c0_i32_0 = arith.constant 0 : i32
    %c0_i32_1 = arith.constant 0 : i32
    return %c0_i32, %c0_i32_0 : i32, i32
  }
  func.func @transform_12(%arg0: i32, %arg1: i32) -> (i32, i32) {
    %c0_i32 = arith.constant 0 : i32
    %c0_i32_0 = arith.constant 0 : i32
    %c0_i32_1 = arith.constant 0 : i32
    return %c0_i32, %c0_i32_0 : i32, i32
  }
}

</mosaic_0001>

<llo_original>
// kernel: tpu_custom_call.1
$region0: #{tpu_custom_call.1}
  #allocation0 [shape = 'u32[]', space=smem, size = 0x4, offset = 0x4, fixed_abs, tag = 'smem constant byte address 0x4 - core index']
  #allocation1 [shape = 'u32[144,128]{1,0:T(1,128)}', space=vmem, size = 0x12000, scoped, tag = 'internal scratch']
  #allocation2 [shape = 'f32[1,1]{1,0:T(1,128)S(1)}', space=vmem, size = 0x200, scoped, tag = 'scoped memory for tpu_custom_call.1']
  %s0 = inlined_call_operand.hbm [shape: bf16[128,8], index: 0, kind: input, shape index: {}]
  %s1 = inlined_call_operand.hbm [shape: f32[1,8], index: 1, kind: input, shape index: {}]
  %s2 = inlined_call_operand.hbm [shape: bf16[512,128], index: 2, kind: input, shape index: {}]
  %s3 = inlined_call_operand.hbm [shape: f32[512,1], index: 3, kind: input, shape index: {}]
  %s4 = inlined_call_operand.hbm [shape: bf16[128,512], index: 4, kind: input, shape index: {}]
  %s5 = inlined_call_operand.hbm [shape: f32[128,1], index: 5, kind: input, shape index: {}]
  %s6 = inlined_call_operand.<no memory space> [shape: f32[1,1], index: 6, kind: input, shape index: {}]
  %s7 = inlined_call_operand.hbm [shape: bf16[32,128], index: 7, kind: input, shape index: {}]
  %s8 = inlined_call_operand.hbm [shape: f32[32,1], index: 8, kind: input, shape index: {}]
  %s9 = inlined_call_operand.hbm [shape: f32[128,1], index: 9, kind: output, shape index: {0}]
  %s10 = inlined_call_operand.hbm [shape: f32[128,1], index: 10, kind: output, shape index: {1}]
  %s11 = inlined_call_operand.hbm [shape: f32[32,1], index: 11, kind: output, shape index: {2}]
  %s12 = inlined_call_operand.hbm [shape: f32[32,1], index: 12, kind: output, shape index: {3}]
  %13 = xla_tuple %s9, %s10, %s11, %s12
  %s14 = sld [smem:[#allocation0]]
  $region149: #{tpu_custom_call.1} parent=0
    _
  %s16 = ssub.s32 1, %s14
  %s17 = scalar_select 0, %s16, %s14
  %v18 = vstv %s6
  %19 = vst [vmem:[#allocation2] sm:$0x1] %v18
  $region1: #{tpu_custom_call.1} parent=0
    #allocation3 [shape = 'u8[32768]{0}', space=vmem, size = 0x8000, scoped, tag = 'input window, operand 0, single buffered']
    #allocation4 [shape = 's32[2]{0}', space=sflag, size = 0x8, scoped, tag = 'scoped memory for tpu_custom_call.1']
    #allocation5 [shape = 's32[2]{0}', space=sflag, size = 0x8, scoped, tag = 'scoped memory for tpu_custom_call.1']
    #allocation6 [shape = 'u8[512]{0}', space=vmem, size = 0x400, scoped, tag = 'input window, operand 1, single buffered']
    #allocation7 [shape = 's32[1]{0}', space=sflag, size = 0x4, scoped, tag = 'scoped memory for tpu_custom_call.1']
    #allocation8 [shape = 'u8[131072]{0}', space=vmem, size = 0x20000, scoped, tag = 'input window, operand 2, single buffered']
    #allocation9 [shape = 'u8[262144]{0}', space=vmem, size = 0x40000, scoped, tag = 'input window, operand 3, single buffered']
    #allocation10 [shape = 's32[1]{0}', space=sflag, size = 0x4, scoped, tag = 'scoped memory for tpu_custom_call.1']
    #allocation11 [shape = 'u8[131072]{0}', space=vmem, size = 0x20000, scoped, tag = 'input window, operand 4, single buffered']
    #allocation12 [shape = 'u8[65536]{0}', space=vmem, size = 0x10000, scoped, tag = 'input window, operand 5, single buffered']
    #allocation13 [shape = 's32[1]{0}', space=sflag, size = 0x4, scoped, tag = 'scoped memory for tpu_custom_call.1']
    #allocation14 [shape = 'u8[8192]{0}', space=vmem, size = 0x2000, scoped, tag = 'input window, operand 7, single buffered']
    #allocation15 [shape = 'u8[16384]{0}', space=vmem, size = 0x4000, scoped, tag = 'input window, operand 8, single buffered']
    #allocation16 [shape = 's32[1]{0}', space=sflag, size = 0x4, scoped, tag = 'scoped memory for tpu_custom_call.1']
    #allocation17 [shape = 'u8[65536]{0}', space=vmem, size = 0x10000, scoped, tag = 'output window, operand 0, single buffered']
    #allocation18 [shape = 'u8[65536]{0}', space=vmem, size = 0x10000, scoped, tag = 'output window, operand 1, single buffered']
    #allocation19 [shape = 's32[1]{0}', space=sflag, size = 0x4, scoped, tag = 'scoped memory for tpu_custom_call.1']
    #allocation20 [shape = 'u8[16384]{0}', space=vmem, size = 0x4000, scoped, tag = 'output window, operand 2, single buffered']
    #allocation21 [shape = 'u8[16384]{0}', space=vmem, size = 0x4000, scoped, tag = 'output window, operand 3, single buffered']
    #allocation22 [shape = 's32[1]{0}', space=sflag, size = 0x4, scoped, tag = 'scoped memory for tpu_custom_call.1']
    %20 = vsyncpa [#allocation4], 0
    %21 = vsyncpa [#allocation7], 0
    %22 = vsyncpa [#allocation10], 0
    %23 = vsyncpa [#allocation13], 0
    %24 = vsyncpa [#allocation16], 0
    %25 = vsyncpa [#allocation5], 0
    %26 = vsyncpa [#allocation19], 0
    %27 = vsyncpa [#allocation22], 0
    loop: start=0, step=1, limit=4
    $region2: #{tpu_custom_call.1} parent=1 // loop_pre_header
      _
    $region3: #{tpu_custom_call.1} parent=1 // loop_header
      %s29 = sphi 0, %s33
      %p30 = scmp.ge.s32.totalorder %s29, 4
      %s36 = sphi 0, %s48
      %s37 = sphi 0, %s44
      %s38 = sphi 0, %s36
      %s39 = sphi 0, %s37
      %s40 = sphi 0, %s38
      %s41 = sphi 0, %s39
      %s51 = sphi 0, %s53
      %s54 = sphi 0, %s51
      %s55 = sphi 0, %s54
      %s71 = sphi 0, %s55
      %s77 = sphi 0, %s79
      %s80 = sphi 0, %s77
      %s81 = sphi 0, %s80
      %s97 = sphi 0, %s81
      %s101 = sphi 0, %s101
      %s103 = sphi 0, %s101
      %s104 = sphi 0, %s103
      %s118 = sphi 0, %s104
      %s122 = sphi 0, %s122
      %s124 = sphi 0, %s122
      %s125 = sphi 0, %s124
      %s139 = sphi 0, %s125
      %s143 = sphi 0, %s143
      %s145 = sphi 0, %s143
      %s146 = sphi 0, %s145
      %s160 = sphi 0, %s146
      %s164 = sphi 0, %s164
      %s166 = sphi 0, %s164
      %s167 = sphi 0, %s166
      %s181 = sphi 0, %s167
      %s185 = sphi 0, %s185
      %s187 = sphi 0, %s185
      %s188 = sphi 0, %s187
      %s202 = sphi 0, %s188
      %s206 = sphi 0, %s206
      %s208 = sphi 0, %s206
      %s209 = sphi 0, %s208
      %s223 = sphi 0, %s209
      %s227 = sphi 0, %s227
      %s229 = sphi 0, %s227
      %s230 = sphi 0, %s229
      %s244 = sphi 0, %s230
      %s248 = sphi 0, %s248
      %s250 = sphi 0, %s248
      %s251 = sphi 0, %s250
      %s265 = sphi 0, %s251
      %s269 = sphi 0, %s269
      %s271 = sphi 0, %s269
      %s272 = sphi 0, %s271
      %s286 = sphi 0, %s272
      %s290 = sphi 0, %s290
      %s292 = sphi 0, %s290
      %s293 = sphi 0, %s292
      %s307 = sphi 0, %s293
      %s311 = sphi 0, %s311
      %s313 = sphi 0, %s311
      %s314 = sphi 0, %s313
      %s328 = sphi 0, %s314
    $region4: #{tpu_custom_call.1} parent=1 // loop_header_branch
      %32 = sbr.rel (%p30) target = $region8
    $region5: #{tpu_custom_call.1} parent=1 // loop_body
      %s34 = ssub.s32 %s29, 1
      %s35 = ssub.s32 %s29, 2
      %s42 = sadd.s32 1, %s37
      %p43 = scmp.ge.s32.totalorder %s42, 1
      %s44 = scalar_select %p43, 0, %s42
      %s45 = sadd.s32 1, %s36
      %s46 = scalar_select %p43, %s45, %s36
      %p47 = scmp.ge.s32.totalorder %s46, 2
      %s48 = scalar_select %p47, 0, %s46
      %s49 = ssub.s32 %s37, %s44
      %p50 = scmp.eq.s32.totalorder %s49, 0
      %s52 = sadd.s32 %s51, 1
      %s53 = scalar_select %p50, %s51, %s52
      %p56 = pneg %p50
      %p57 = scmp.eq.s32.totalorder %s29, 1
      %p58 = por %p56, %p57
      %p59 = scmp.ne.s32.totalorder %s51, %s54
      %p60 = scmp.eq.s32.totalorder %s29, 0
      %p61 = por %p59, %p60
      %p62 = scmp.ne.s32.totalorder %s51, %s54
      %p63 = scmp.eq.s32.totalorder %s34, 1
      %p64 = por %p62, %p63
      %p65 = scmp.ne.s32.totalorder %s54, %s55
      %p66 = scmp.eq.s32.totalorder %s34, 0
      %p67 = por %p65, %p66
      %p68 = scmp.ne.s32.totalorder %s54, %s55
      %p69 = scmp.eq.s32.totalorder %s35, 1
      %p70 = por %p68, %p69
      %p72 = scmp.ne.s32.totalorder %s55, %s71
      %p73 = scmp.eq.s32.totalorder %s35, 0
      %p74 = por %p72, %p73
      %s75 = ssub.s32 %s37, %s44
      %p76 = scmp.eq.s32.totalorder %s75, 0
      %s78 = sadd.s32 %s77, 1
      %s79 = scalar_select %p76, %s77, %s78
      %p82 = pneg %p76
      %p83 = scmp.eq.s32.totalorder %s29, 1
      %p84 = por %p82, %p83
      %p85 = scmp.ne.s32.totalorder %s77, %s80
      %p86 = scmp.eq.s32.totalorder %s29, 0
      %p87 = por %p85, %p86
      %p88 = scmp.ne.s32.totalorder %s77, %s80
      %p89 = scmp.eq.s32.totalorder %s34, 1
      %p90 = por %p88, %p89
      %p91 = scmp.ne.s32.totalorder %s80, %s81
      %p92 = scmp.eq.s32.totalorder %s34, 0
      %p93 = por %p91, %p92
      %p94 = scmp.ne.s32.totalorder %s80, %s81
      %p95 = scmp.eq.s32.totalorder %s35, 1
      %p96 = por %p94, %p95
      %p98 = scmp.ne.s32.totalorder %s81, %s97
      %p99 = scmp.eq.s32.totalorder %s35, 0
      %p100 = por %p98, %p99
      %s102 = sadd.s32 %s101, 1
      %p105 = scmp.eq.s32.totalorder %s29, 1
      %p106 = scmp.ne.s32.totalorder %s101, %s103
      %p107 = scmp.eq.s32.totalorder %s29, 0
      %p108 = por %p106, %p107
      %p109 = scmp.ne.s32.totalorder %s101, %s103
      %p110 = scmp.eq.s32.totalorder %s34, 1
      %p111 = por %p109, %p110
      %p112 = scmp.ne.s32.totalorder %s103, %s104
      %p113 = scmp.eq.s32.totalorder %s34, 0
      %p114 = por %p112, %p113
      %p115 = scmp.ne.s32.totalorder %s103, %s104
      %p116 = scmp.eq.s32.totalorder %s35, 1
      %p117 = por %p115, %p116
      %p119 = scmp.ne.s32.totalorder %s104, %s118
      %p120 = scmp.eq.s32.totalorder %s35, 0
      %p121 = por %p119, %p120
      %s123 = sadd.s32 %s122, 1
      %p126 = scmp.eq.s32.totalorder %s29, 1
      %p127 = scmp.ne.s32.totalorder %s122, %s124
      %p128 = scmp.eq.s32.totalorder %s29, 0
      %p129 = por %p127, %p128
      %p130 = scmp.ne.s32.totalorder %s122, %s124
      %p131 = scmp.eq.s32.totalorder %s34, 1
      %p132 = por %p130, %p131
      %p133 = scmp.ne.s32.totalorder %s124, %s125
      %p134 = scmp.eq.s32.totalorder %s34, 0
      %p135 = por %p133, %p134
      %p136 = scmp.ne.s32.totalorder %s124, %s125
      %p137 = scmp.eq.s32.totalorder %s35, 1
      %p138 = por %p136, %p137
      %p140 = scmp.ne.s32.totalorder %s125, %s139
      %p141 = scmp.eq.s32.totalorder %s35, 0
      %p142 = por %p140, %p141
      %s144 = sadd.s32 %s143, 1
      %p147 = scmp.eq.s32.totalorder %s29, 1
      %p148 = scmp.ne.s32.totalorder %s143, %s145
      %p149 = scmp.eq.s32.totalorder %s29, 0
      %p150 = por %p148, %p149
      %p151 = scmp.ne.s32.totalorder %s143, %s145
      %p152 = scmp.eq.s32.totalorder %s34, 1
      %p153 = por %p151, %p152
      %p154 = scmp.ne.s32.totalorder %s145, %s146
      %p155 = scmp.eq.s32.totalorder %s34, 0
      %p156 = por %p154, %p155
      %p157 = scmp.ne.s32.totalorder %s145, %s146
      %p158 = scmp.eq.s32.totalorder %s35, 1
      %p159 = por %p157, %p158
      %p161 = scmp.ne.s32.totalorder %s146, %s160
      %p162 = scmp.eq.s32.totalorder %s35, 0
      %p163 = por %p161, %p162
      %s165 = sadd.s32 %s164, 1
      %p168 = scmp.eq.s32.totalorder %s29, 1
      %p169 = scmp.ne.s32.totalorder %s164, %s166
      %p170 = scmp.eq.s32.totalorder %s29, 0
      %p171 = por %p169, %p170
      %p172 = scmp.ne.s32.totalorder %s164, %s166
      %p173 = scmp.eq.s32.totalorder %s34, 1
      %p174 = por %p172, %p173
      %p175 = scmp.ne.s32.totalorder %s166, %s167
      %p176 = scmp.eq.s32.totalorder %s34, 0
      %p177 = por %p175, %p176
      %p178 = scmp.ne.s32.totalorder %s166, %s167
      %p179 = scmp.eq.s32.totalorder %s35, 1
      %p180 = por %p178, %p179
      %p182 = scmp.ne.s32.totalorder %s167, %s181
      %p183 = scmp.eq.s32.totalorder %s35, 0
      %p184 = por %p182, %p183
      %s186 = sadd.s32 %s185, 1
      %p189 = scmp.eq.s32.totalorder %s29, 1
      %p190 = scmp.ne.s32.totalorder %s185, %s187
      %p191 = scmp.eq.s32.totalorder %s29, 0
      %p192 = por %p190, %p191
      %p193 = scmp.ne.s32.totalorder %s185, %s187
      %p194 = scmp.eq.s32.totalorder %s34, 1
      %p195 = por %p193, %p194
      %p196 = scmp.ne.s32.totalorder %s187, %s188
      %p197 = scmp.eq.s32.totalorder %s34, 0
      %p198 = por %p196, %p197
      %p199 = scmp.ne.s32.totalorder %s187, %s188
      %p200 = scmp.eq.s32.totalorder %s35, 1
      %p201 = por %p199, %p200
      %p203 = scmp.ne.s32.totalorder %s188, %s202
      %p204 = scmp.eq.s32.totalorder %s35, 0
      %p205 = por %p203, %p204
      %s207 = sadd.s32 %s206, 1
      %p210 = scmp.eq.s32.totalorder %s29, 1
      %p211 = scmp.ne.s32.totalorder %s206, %s208
      %p212 = scmp.eq.s32.totalorder %s29, 0
      %p213 = por %p211, %p212
      %p214 = scmp.ne.s32.totalorder %s206, %s208
      %p215 = scmp.eq.s32.totalorder %s34, 1
      %p216 = por %p214, %p215
      %p217 = scmp.ne.s32.totalorder %s208, %s209
      %p218 = scmp.eq.s32.totalorder %s34, 0
      %p219 = por %p217, %p218
      %p220 = scmp.ne.s32.totalorder %s208, %s209
      %p221 = scmp.eq.s32.totalorder %s35, 1
      %p222 = por %p220, %p221
      %p224 = scmp.ne.s32.totalorder %s209, %s223
      %p225 = scmp.eq.s32.totalorder %s35, 0
      %p226 = por %p224, %p225
      %s228 = sadd.s32 %s227, 1
      %p231 = scmp.eq.s32.totalorder %s29, 1
      %p232 = scmp.ne.s32.totalorder %s227, %s229
      %p233 = scmp.eq.s32.totalorder %s29, 0
      %p234 = por %p232, %p233
      %p235 = scmp.ne.s32.totalorder %s227, %s229
      %p236 = scmp.eq.s32.totalorder %s34, 1
      %p237 = por %p235, %p236
      %p238 = scmp.ne.s32.totalorder %s229, %s230
      %p239 = scmp.eq.s32.totalorder %s34, 0
      %p240 = por %p238, %p239
      %p241 = scmp.ne.s32.totalorder %s229, %s230
      %p242 = scmp.eq.s32.totalorder %s35, 1
      %p243 = por %p241, %p242
      %p245 = scmp.ne.s32.totalorder %s230, %s244
      %p246 = scmp.eq.s32.totalorder %s35, 0
      %p247 = por %p245, %p246
      %s249 = sadd.s32 %s248, 1
      %p252 = scmp.eq.s32.totalorder %s29, 1
      %p253 = scmp.ne.s32.totalorder %s248, %s250
      %p254 = scmp.eq.s32.totalorder %s29, 0
      %p255 = por %p253, %p254
      %p256 = scmp.ne.s32.totalorder %s248, %s250
      %p257 = scmp.eq.s32.totalorder %s34, 1
      %p258 = por %p256, %p257
      %p259 = scmp.ne.s32.totalorder %s250, %s251
      %p260 = scmp.eq.s32.totalorder %s34, 0
      %p261 = por %p259, %p260
      %p262 = scmp.ne.s32.totalorder %s250, %s251
      %p263 = scmp.eq.s32.totalorder %s35, 1
      %p264 = por %p262, %p263
      %p266 = scmp.ne.s32.totalorder %s251, %s265
      %p267 = scmp.eq.s32.totalorder %s35, 0
      %p268 = por %p266, %p267
      %s270 = sadd.s32 %s269, 1
      %p273 = scmp.eq.s32.totalorder %s29, 1
      %p274 = scmp.ne.s32.totalorder %s269, %s271
      %p275 = scmp.eq.s32.totalorder %s29, 0
      %p276 = por %p274, %p275
      %p277 = scmp.ne.s32.totalorder %s269, %s271
      %p278 = scmp.eq.s32.totalorder %s34, 1
      %p279 = por %p277, %p278
      %p280 = scmp.ne.s32.totalorder %s271, %s272
      %p281 = scmp.eq.s32.totalorder %s34, 0
      %p282 = por %p280, %p281
      %p283 = scmp.ne.s32.totalorder %s271, %s272
      %p284 = scmp.eq.s32.totalorder %s35, 1
      %p285 = por %p283, %p284
      %p287 = scmp.ne.s32.totalorder %s272, %s286
      %p288 = scmp.eq.s32.totalorder %s35, 0
      %p289 = por %p287, %p288
      %s291 = sadd.s32 %s290, 1
      %p294 = scmp.eq.s32.totalorder %s29, 1
      %p295 = scmp.ne.s32.totalorder %s290, %s292
      %p296 = scmp.eq.s32.totalorder %s29, 0
      %p297 = por %p295, %p296
      %p298 = scmp.ne.s32.totalorder %s290, %s292
      %p299 = scmp.eq.s32.totalorder %s34, 1
      %p300 = por %p298, %p299
      %p301 = scmp.ne.s32.totalorder %s292, %s293
      %p302 = scmp.eq.s32.totalorder %s34, 0
      %p303 = por %p301, %p302
      %p304 = scmp.ne.s32.totalorder %s292, %s293
      %p305 = scmp.eq.s32.totalorder %s35, 1
      %p306 = por %p304, %p305
      %p308 = scmp.ne.s32.totalorder %s293, %s307
      %p309 = scmp.eq.s32.totalorder %s35, 0
      %p310 = por %p308, %p309
      %s312 = sadd.s32 %s311, 1
      %p315 = scmp.eq.s32.totalorder %s29, 1
      %p316 = scmp.ne.s32.totalorder %s311, %s313
      %p317 = scmp.eq.s32.totalorder %s29, 0
      %p318 = por %p316, %p317
      %p319 = scmp.ne.s32.totalorder %s311, %s313
      %p320 = scmp.eq.s32.totalorder %s34, 1
      %p321 = por %p319, %p320
      %p322 = scmp.ne.s32.totalorder %s313, %s314
      %p323 = scmp.eq.s32.totalorder %s34, 0
      %p324 = por %p322, %p323
      %p325 = scmp.ne.s32.totalorder %s313, %s314
      %p326 = scmp.eq.s32.totalorder %s35, 1
      %p327 = por %p325, %p326
      %p329 = scmp.ne.s32.totalorder %s314, %s328
      %p330 = scmp.eq.s32.totalorder %s35, 0
      %p331 = por %p329, %p330
      %p332 = scmp.le.s32.totalorder 1, %s29
      %p333 = scmp.lt.s32.totalorder %s29, 3
      %p334 = pnand %p332, %p333
      %p335 = pneg %p334
      // Predicated region
      $region9: #{tpu_custom_call.1} parent=5 // pred_check
        _
      $region10: #{tpu_custom_call.1} parent=5 // pred_check_branch
        %337 = sbr.rel (%p334) target = $region12
      $region11: #{tpu_custom_call.1} parent=5 // pred_region
        %s338 = ssub.s32 %s29, 1
        // Predicated region
        $region13: #{tpu_custom_call.1} parent=11 // pred_check
          %p339 = pneg %p67
        $region14: #{tpu_custom_call.1} parent=11 // pred_check_branch
          %341 = sbr.rel (%p339) target = $region16
        $region15: #{tpu_custom_call.1} parent=11 // pred_region
          %s343 = ssub.s32 1024, 1024
          %344 = vsyncadd [#allocation4], %s343
          %s345 = smul.addr %s39, 64
          %s346 = scalar_lea.hbm %s0, %s345
          %s347 = sshll.u32 [#allocation3], 4
          %s348 = int_to_ptr.vmem [resolvable:$true] %s347
          %353 = dma.hbm_to_vmem [thread:$0]  %s346, 1024, %s348, [#allocation4], 64, 64, 4
        $region16: #{tpu_custom_call.1} parent=11 // pred_fallthru
          _
        // Predicated region
        $region17: #{tpu_custom_call.1} parent=11 // pred_check
          %p354 = pneg %p93
        $region18: #{tpu_custom_call.1} parent=11 // pred_check_branch
          %356 = sbr.rel (%p354) target = $region20
        $region19: #{tpu_custom_call.1} parent=11 // pred_region
          %s358 = ssub.s32 16, 16
          %359 = vsyncadd [#allocation7], %s358
          %s360 = smul.addr %s39, 16
          %s361 = scalar_lea.hbm %s1, %s360
          %s363 = sshll.u32 [#allocation6], 4
          %s364 = int_to_ptr.vmem [resolvable:$true] %s363
          %366 = dma.hbm_to_vmem [thread:$0]  %s361, 16, %s364, [#allocation7]
        $region20: #{tpu_custom_call.1} parent=11 // pred_fallthru
          _
        // Predicated region
        $region21: #{tpu_custom_call.1} parent=11 // pred_check
          %p367 = pneg %p114
        $region22: #{tpu_custom_call.1} parent=11 // pred_check_branch
          %369 = sbr.rel (%p367) target = $region24
        $region23: #{tpu_custom_call.1} parent=11 // pred_region
          %s371 = ssub.s32 4096, 4096
          %372 = vsyncadd [#allocation7], %s371
          %s373 = sshll.u32 [#allocation8], 4
          %s374 = int_to_ptr.vmem [resolvable:$true] %s373
          %379 = dma.hbm_to_vmem [thread:$0]  %s2, 4096, %s374, [#allocation7], 64, 64, 4
        $region24: #{tpu_custom_call.1} parent=11 // pred_fallthru
          _
        // Predicated region
        $region25: #{tpu_custom_call.1} parent=11 // pred_check
          %p380 = pneg %p135
        $region26: #{tpu_custom_call.1} parent=11 // pred_check_branch
          %382 = sbr.rel (%p380) target = $region28
        $region27: #{tpu_custom_call.1} parent=11 // pred_region
          %s384 = ssub.s32 8192, 8192
          %385 = vsyncadd [#allocation10], %s384
          %s386 = sshll.u32 [#allocation9], 4
          %s387 = int_to_ptr.vmem [resolvable:$true] %s386
          %392 = dma.hbm_to_vmem [thread:$0]  %s3, 8192, %s387, [#allocation10], 128, 128, 8
        $region28: #{tpu_custom_call.1} parent=11 // pred_fallthru
          _
        // Predicated region
        $region29: #{tpu_custom_call.1} parent=11 // pred_check
          %p393 = pneg %p156
        $region30: #{tpu_custom_call.1} parent=11 // pred_check_branch
          %395 = sbr.rel (%p393) target = $region32
        $region31: #{tpu_custom_call.1} parent=11 // pred_region
          %s397 = ssub.s32 4096, 4096
          %398 = vsyncadd [#allocation10], %s397
          %s399 = sshll.u32 [#allocation11], 4
          %s400 = int_to_ptr.vmem [resolvable:$true] %s399
          %405 = dma.hbm_to_vmem [thread:$0]  %s4, 4096, %s400, [#allocation10], 256, 256, 16
        $region32: #{tpu_custom_call.1} parent=11 // pred_fallthru
          _
        // Predicated region
        $region33: #{tpu_custom_call.1} parent=11 // pred_check
          %p406 = pneg %p177
        $region34: #{tpu_custom_call.1} parent=11 // pred_check_branch
          %408 = sbr.rel (%p406) target = $region36
        $region35: #{tpu_custom_call.1} parent=11 // pred_region
          %s410 = ssub.s32 2048, 2048
          %411 = vsyncadd [#allocation13], %s410
          %s412 = sshll.u32 [#allocation12], 4
          %s413 = int_to_ptr.vmem [resolvable:$true] %s412
          %418 = dma.hbm_to_vmem [thread:$0]  %s5, 2048, %s413, [#allocation13], 128, 128, 8
        $region36: #{tpu_custom_call.1} parent=11 // pred_fallthru
          _
        // Predicated region
        $region37: #{tpu_custom_call.1} parent=11 // pred_check
          %p419 = pneg %p198
        $region38: #{tpu_custom_call.1} parent=11 // pred_check_branch
          %421 = sbr.rel (%p419) target = $region40
        $region39: #{tpu_custom_call.1} parent=11 // pred_region
          _
        $region40: #{tpu_custom_call.1} parent=11 // pred_fallthru
          _
        // Predicated region
        $region41: #{tpu_custom_call.1} parent=11 // pred_check
          %p422 = pneg %p219
        $region42: #{tpu_custom_call.1} parent=11 // pred_check_branch
          %424 = sbr.rel (%p422) target = $region44
        $region43: #{tpu_custom_call.1} parent=11 // pred_region
          %s426 = ssub.s32 256, 256
          %427 = vsyncadd [#allocation13], %s426
          %s428 = sshll.u32 [#allocation14], 4
          %s429 = int_to_ptr.vmem [resolvable:$true] %s428
          %434 = dma.hbm_to_vmem [thread:$0]  %s7, 256, %s429, [#allocation13], 64, 64, 4
        $region44: #{tpu_custom_call.1} parent=11 // pred_fallthru
          _
        // Predicated region
        $region45: #{tpu_custom_call.1} parent=11 // pred_check
          %p435 = pneg %p240
        $region46: #{tpu_custom_call.1} parent=11 // pred_check_branch
          %437 = sbr.rel (%p435) target = $region48
        $region47: #{tpu_custom_call.1} parent=11 // pred_region
          %s439 = ssub.s32 512, 512
          %440 = vsyncadd [#allocation16], %s439
          %s441 = sshll.u32 [#allocation15], 4
          %s442 = int_to_ptr.vmem [resolvable:$true] %s441
          %447 = dma.hbm_to_vmem [thread:$0]  %s8, 512, %s442, [#allocation16], 128, 128, 8
        $region48: #{tpu_custom_call.1} parent=11 // pred_fallthru
          _
      $region12: #{tpu_custom_call.1} parent=5 // pred_fallthru
        _
      %p448 = scmp.lt.s32.totalorder %s29, 2
      // Predicated region
      $region49: #{tpu_custom_call.1} parent=5 // pred_check
        %p449 = pneg %p448
      $region50: #{tpu_custom_call.1} parent=5 // pred_check_branch
        %451 = sbr.rel (%p449) target = $region52
      $region51: #{tpu_custom_call.1} parent=5 // pred_region
        _
      $region52: #{tpu_custom_call.1} parent=5 // pred_fallthru
        _
      %p452 = scmp.le.s32.totalorder 1, %s29
      %p453 = scmp.lt.s32.totalorder %s29, 3
      %p454 = pnand %p452, %p453
      %p455 = pneg %p454
      // Predicated region
      $region53: #{tpu_custom_call.1} parent=5 // pred_check
        _
      $region54: #{tpu_custom_call.1} parent=5 // pred_check_branch
        %457 = sbr.rel (%p454) target = $region56
      $region55: #{tpu_custom_call.1} parent=5 // pred_region
        %s458 = ssub.s32 %s29, 1
        // Predicated region
        $region57: #{tpu_custom_call.1} parent=55 // pred_check
          %p459 = pneg %p67
        $region58: #{tpu_custom_call.1} parent=55 // pred_check_branch
          %461 = sbr.rel (%p459) target = $region60
        $region59: #{tpu_custom_call.1} parent=55 // pred_region
          %462 = dma.done [#allocation4], 1024
        $region60: #{tpu_custom_call.1} parent=55 // pred_fallthru
          _
        // Predicated region
        $region61: #{tpu_custom_call.1} parent=55 // pred_check
          %p463 = pneg %p93
        $region62: #{tpu_custom_call.1} parent=55 // pred_check_branch
          %465 = sbr.rel (%p463) target = $region64
        $region63: #{tpu_custom_call.1} parent=55 // pred_region
          %466 = dma.done [#allocation7], 16
        $region64: #{tpu_custom_call.1} parent=55 // pred_fallthru
          _
        // Predicated region
        $region65: #{tpu_custom_call.1} parent=55 // pred_check
          %p467 = pneg %p114
        $region66: #{tpu_custom_call.1} parent=55 // pred_check_branch
          %469 = sbr.rel (%p467) target = $region68
        $region67: #{tpu_custom_call.1} parent=55 // pred_region
          %470 = dma.done [#allocation7], 4096
        $region68: #{tpu_custom_call.1} parent=55 // pred_fallthru
          _
        // Predicated region
        $region69: #{tpu_custom_call.1} parent=55 // pred_check
          %p471 = pneg %p135
        $region70: #{tpu_custom_call.1} parent=55 // pred_check_branch
          %473 = sbr.rel (%p471) target = $region72
        $region71: #{tpu_custom_call.1} parent=55 // pred_region
          %474 = dma.done [#allocation10], 8192
        $region72: #{tpu_custom_call.1} parent=55 // pred_fallthru
          _
        // Predicated region
        $region73: #{tpu_custom_call.1} parent=55 // pred_check
          %p475 = pneg %p156
        $region74: #{tpu_custom_call.1} parent=55 // pred_check_branch
          %477 = sbr.rel (%p475) target = $region76
        $region75: #{tpu_custom_call.1} parent=55 // pred_region
          %478 = dma.done [#allocation10], 4096
        $region76: #{tpu_custom_call.1} parent=55 // pred_fallthru
          _
        // Predicated region
        $region77: #{tpu_custom_call.1} parent=55 // pred_check
          %p479 = pneg %p177
        $region78: #{tpu_custom_call.1} parent=55 // pred_check_branch
          %481 = sbr.rel (%p479) target = $region80
        $region79: #{tpu_custom_call.1} parent=55 // pred_region
          %482 = dma.done [#allocation13], 2048
        $region80: #{tpu_custom_call.1} parent=55 // pred_fallthru
          _
        // Predicated region
        $region81: #{tpu_custom_call.1} parent=55 // pred_check
          %p483 = pneg %p219
        $region82: #{tpu_custom_call.1} parent=55 // pred_check_branch
          %485 = sbr.rel (%p483) target = $region84
        $region83: #{tpu_custom_call.1} parent=55 // pred_region
          %486 = dma.done [#allocation13], 256
        $region84: #{tpu_custom_call.1} parent=55 // pred_fallthru
          _
        // Predicated region
        $region85: #{tpu_custom_call.1} parent=55 // pred_check
          %p487 = pneg %p240
        $region86: #{tpu_custom_call.1} parent=55 // pred_check_branch
          %489 = sbr.rel (%p487) target = $region88
        $region87: #{tpu_custom_call.1} parent=55 // pred_region
          %490 = dma.done [#allocation16], 512
        $region88: #{tpu_custom_call.1} parent=55 // pred_fallthru
          _
        %p491 = pneg %p67
        %p492 = pneg %p64
        %p493 = pneg %p93
        %p494 = pneg %p90
        %p495 = pneg %p114
        %p496 = pneg %p111
        %p497 = pneg %p135
        %p498 = pneg %p132
        %p499 = pneg %p156
        %p500 = pneg %p153
        %p501 = pneg %p177
        %p502 = pneg %p174
        %p503 = pneg %p198
        %p504 = pneg %p195
        %p505 = pneg %p219
        %p506 = pneg %p216
        %p507 = pneg %p240
        %p508 = pneg %p237
        %p509 = pneg %p261
        %p510 = pneg %p258
        %p511 = pneg %p282
        %p512 = pneg %p279
        %p513 = pneg %p303
        %p514 = pneg %p300
        %p515 = pneg %p324
        %p516 = pneg %p321
        %v518 = vld [vmem:[#allocation3] sm:$0xf]
        %v519 = vld [vmem:[#allocation3 + $0x4] sm:$0xf]
        %v520 = vld [vmem:[#allocation3 + $0x8] sm:$0xf]
        %v521 = vld [vmem:[#allocation3 + $0xc] sm:$0xf]
        %v522 = vld [vmem:[#allocation3 + $0x10] sm:$0xf]
        %v523 = vld [vmem:[#allocation3 + $0x14] sm:$0xf]
        %v524 = vld [vmem:[#allocation3 + $0x18] sm:$0xf]
        %v525 = vld [vmem:[#allocation3 + $0x1c] sm:$0xf]
        %v526 = vld [vmem:[#allocation3 + $0x20] sm:$0xf]
        %v527 = vld [vmem:[#allocation3 + $0x24] sm:$0xf]
        %v528 = vld [vmem:[#allocation3 + $0x28] sm:$0xf]
        %v529 = vld [vmem:[#allocation3 + $0x2c] sm:$0xf]
        %v530 = vld [vmem:[#allocation3 + $0x30] sm:$0xf]
        %v531 = vld [vmem:[#allocation3 + $0x34] sm:$0xf]
        %v532 = vld [vmem:[#allocation3 + $0x38] sm:$0xf]
        %v533 = vld [vmem:[#allocation3 + $0x3c] sm:$0xf]
        %v534 = vld [vmem:[#allocation6] sm:$0x1]
        %p535 = scmp.eq.s32.totalorder %s38, 0
        // Predicated region
        $region89: #{tpu_custom_call.1} parent=55 // pred_check
          %p536 = pneg %p535
        $region90: #{tpu_custom_call.1} parent=55 // pred_check_branch
          %538 = sbr.rel (%p536) target = $region92
        $region91: #{tpu_custom_call.1} parent=55 // pred_region
          %p539 = scmp.eq.s32.totalorder %s39, 0
          // Predicated region
          $region93: #{tpu_custom_call.1} parent=91 // pred_check
            %p540 = pneg %p539
          $region94: #{tpu_custom_call.1} parent=91 // pred_check_branch
            %542 = sbr.rel (%p540) target = $region96
          $region95: #{tpu_custom_call.1} parent=91 // pred_region
            %vm543 = vcmask 7168
            %544 = vst.msk [vmem:[#allocation17] sm:$0xff] %vm543, 0.0
            %545 = vst.msk [vmem:[#allocation17 + $0x8] sm:$0xff] %vm543, 0.0
            %546 = vst.msk [vmem:[#allocation17 + $0x10] sm:$0xff] %vm543, 0.0
            %547 = vst.msk [vmem:[#allocation17 + $0x18] sm:$0xff] %vm543, 0.0
            %548 = vst.msk [vmem:[#allocation17 + $0x20] sm:$0xff] %vm543, 0.0
            %549 = vst.msk [vmem:[#allocation17 + $0x28] sm:$0xff] %vm543, 0.0
            %550 = vst.msk [vmem:[#allocation17 + $0x30] sm:$0xff] %vm543, 0.0
            %551 = vst.msk [vmem:[#allocation17 + $0x38] sm:$0xff] %vm543, 0.0
            %552 = vst.msk [vmem:[#allocation17 + $0x40] sm:$0xff] %vm543, 0.0
            %553 = vst.msk [vmem:[#allocation17 + $0x48] sm:$0xff] %vm543, 0.0
            %554 = vst.msk [vmem:[#allocation17 + $0x50] sm:$0xff] %vm543, 0.0
            %555 = vst.msk [vmem:[#allocation17 + $0x58] sm:$0xff] %vm543, 0.0
            %556 = vst.msk [vmem:[#allocation17 + $0x60] sm:$0xff] %vm543, 0.0
            %557 = vst.msk [vmem:[#allocation17 + $0x68] sm:$0xff] %vm543, 0.0
            %558 = vst.msk [vmem:[#allocation17 + $0x70] sm:$0xff] %vm543, 0.0
            %559 = vst.msk [vmem:[#allocation17 + $0x78] sm:$0xff] %vm543, 0.0
          $region96: #{tpu_custom_call.1} parent=91 // pred_fallthru
            _
          %v560 = vld [vmem:[#allocation8] sm:$0xf]
          %v561 = vld [vmem:[#allocation8 + $0x4] sm:$0xf]
          %v562 = vld [vmem:[#allocation8 + $0x8] sm:$0xf]
          %v563 = vld [vmem:[#allocation8 + $0xc] sm:$0xf]
          %v564 = vld [vmem:[#allocation8 + $0x10] sm:$0xf]
          %v565 = vld [vmem:[#allocation8 + $0x14] sm:$0xf]
          %v566 = vld [vmem:[#allocation8 + $0x18] sm:$0xf]
          %v567 = vld [vmem:[#allocation8 + $0x1c] sm:$0xf]
          %v568 = vld [vmem:[#allocation8 + $0x20] sm:$0xf]
          %v569 = vld [vmem:[#allocation8 + $0x24] sm:$0xf]
          %v570 = vld [vmem:[#allocation8 + $0x28] sm:$0xf]
          %v571 = vld [vmem:[#allocation8 + $0x2c] sm:$0xf]
          %v572 = vld [vmem:[#allocation8 + $0x30] sm:$0xf]
          %v573 = vld [vmem:[#allocation8 + $0x34] sm:$0xf]
          %v574 = vld [vmem:[#allocation8 + $0x38] sm:$0xf]
          %v575 = vld [vmem:[#allocation8 + $0x3c] sm:$0xf]
          %v576 = vld [vmem:[#allocation8 + $0x40] sm:$0xf]
          %v577 = vld [vmem:[#allocation8 + $0x44] sm:$0xf]
          %v578 = vld [vmem:[#allocation8 + $0x48] sm:$0xf]
          %v579 = vld [vmem:[#allocation8 + $0x4c] sm:$0xf]
          %v580 = vld [vmem:[#allocation8 + $0x50] sm:$0xf]
          %v581 = vld [vmem:[#allocation8 + $0x54] sm:$0xf]
          %v582 = vld [vmem:[#allocation8 + $0x58] sm:$0xf]
          %v583 = vld [vmem:[#allocation8 + $0x5c] sm:$0xf]
          %v584 = vld [vmem:[#allocation8 + $0x60] sm:$0xf]
          %v585 = vld [vmem:[#allocation8 + $0x64] sm:$0xf]
          %v586 = vld [vmem:[#allocation8 + $0x68] sm:$0xf]
          %v587 = vld [vmem:[#allocation8 + $0x6c] sm:$0xf]
          %v588 = vld [vmem:[#allocation8 + $0x70] sm:$0xf]
          %v589 = vld [vmem:[#allocation8 + $0x74] sm:$0xf]
          %v590 = vld [vmem:[#allocation8 + $0x78] sm:$0xf]
          %v591 = vld [vmem:[#allocation8 + $0x7c] sm:$0xf]
          %v592 = vld [vmem:[#allocation8 + $0x80] sm:$0xf]
          %v593 = vld [vmem:[#allocation8 + $0x84] sm:$0xf]
          %v594 = vld [vmem:[#allocation8 + $0x88] sm:$0xf]
          %v595 = vld [vmem:[#allocation8 + $0x8c] sm:$0xf]
          %v596 = vld [vmem:[#allocation8 + $0x90] sm:$0xf]
          %v597 = vld [vmem:[#allocation8 + $0x94] sm:$0xf]
          %v598 = vld [vmem:[#allocation8 + $0x98] sm:$0xf]
          %v599 = vld [vmem:[#allocation8 + $0x9c] sm:$0xf]
          %v600 = vld [vmem:[#allocation8 + $0xa0] sm:$0xf]
          %v601 = vld [vmem:[#allocation8 + $0xa4] sm:$0xf]
          %v602 = vld [vmem:[#allocation8 + $0xa8] sm:$0xf]
          %v603 = vld [vmem:[#allocation8 + $0xac] sm:$0xf]
          %v604 = vld [vmem:[#allocation8 + $0xb0] sm:$0xf]
          %v605 = vld [vmem:[#allocation8 + $0xb4] sm:$0xf]
          %v606 = vld [vmem:[#allocation8 + $0xb8] sm:$0xf]
          %v607 = vld [vmem:[#allocation8 + $0xbc] sm:$0xf]
          %v608 = vld [vmem:[#allocation8 + $0xc0] sm:$0xf]
          %v609 = vld [vmem:[#allocation8 + $0xc4] sm:$0xf]
          %v610 = vld [vmem:[#allocation8 + $0xc8] sm:$0xf]
          %v611 = vld [vmem:[#allocation8 + $0xcc] sm:$0xf]
          %v612 = vld [vmem:[#allocation8 + $0xd0] sm:$0xf]
          %v613 = vld [vmem:[#allocation8 + $0xd4] sm:$0xf]
          %v614 = vld [vmem:[#allocation8 + $0xd8] sm:$0xf]
          %v615 = vld [vmem:[#allocation8 + $0xdc] sm:$0xf]
          %v616 = vld [vmem:[#allocation8 + $0xe0] sm:$0xf]
          %v617 = vld [vmem:[#allocation8 + $0xe4] sm:$0xf]
          %v618 = vld [vmem:[#allocation8 + $0xe8] sm:$0xf]
          %v619 = vld [vmem:[#allocation8 + $0xec] sm:$0xf]
          %v620 = vld [vmem:[#allocation8 + $0xf0] sm:$0xf]
          %v621 = vld [vmem:[#allocation8 + $0xf4] sm:$0xf]
          %v622 = vld [vmem:[#allocation8 + $0xf8] sm:$0xf]
          %v623 = vld [vmem:[#allocation8 + $0xfc] sm:$0xf]
          %v624 = vld [vmem:[#allocation9] sm:$0xff]
          %v625 = vld [vmem:[#allocation9 + $0x8] sm:$0xff]
          %v626 = vld [vmem:[#allocation9 + $0x10] sm:$0xff]
          %v627 = vld [vmem:[#allocation9 + $0x18] sm:$0xff]
          %v628 = vld [vmem:[#allocation9 + $0x20] sm:$0xff]
          %v629 = vld [vmem:[#allocation9 + $0x28] sm:$0xff]
          %v630 = vld [vmem:[#allocation9 + $0x30] sm:$0xff]
          %v631 = vld [vmem:[#allocation9 + $0x38] sm:$0xff]
          %v632 = vld [vmem:[#allocation9 + $0x40] sm:$0xff]
          %v633 = vld [vmem:[#allocation9 + $0x48] sm:$0xff]
          %v634 = vld [vmem:[#allocation9 + $0x50] sm:$0xff]
          %v635 = vld [vmem:[#allocation9 + $0x58] sm:$0xff]
          %v636 = vld [vmem:[#allocation9 + $0x60] sm:$0xff]
          %v637 = vld [vmem:[#allocation9 + $0x68] sm:$0xff]
          %v638 = vld [vmem:[#allocation9 + $0x70] sm:$0xff]
          %v639 = vld [vmem:[#allocation9 + $0x78] sm:$0xff]
          %v640 = vld [vmem:[#allocation9 + $0x80] sm:$0xff]
          %v641 = vld [vmem:[#allocation9 + $0x88] sm:$0xff]
          %v642 = vld [vmem:[#allocation9 + $0x90] sm:$0xff]
          %v643 = vld [vmem:[#allocation9 + $0x98] sm:$0xff]
          %v644 = vld [vmem:[#allocation9 + $0xa0] sm:$0xff]
          %v645 = vld [vmem:[#allocation9 + $0xa8] sm:$0xff]
          %v646 = vld [vmem:[#allocation9 + $0xb0] sm:$0xff]
          %v647 = vld [vmem:[#allocation9 + $0xb8] sm:$0xff]
          %v648 = vld [vmem:[#allocation9 + $0xc0] sm:$0xff]
          %v649 = vld [vmem:[#allocation9 + $0xc8] sm:$0xff]
          %v650 = vld [vmem:[#allocation9 + $0xd0] sm:$0xff]
          %v651 = vld [vmem:[#allocation9 + $0xd8] sm:$0xff]
          %v652 = vld [vmem:[#allocation9 + $0xe0] sm:$0xff]
          %v653 = vld [vmem:[#allocation9 + $0xe8] sm:$0xff]
          %v654 = vld [vmem:[#allocation9 + $0xf0] sm:$0xff]
          %v655 = vld [vmem:[#allocation9 + $0xf8] sm:$0xff]
          %v656 = vld [vmem:[#allocation9 + $0x100] sm:$0xff]
          %v657 = vld [vmem:[#allocation9 + $0x108] sm:$0xff]
          %v658 = vld [vmem:[#allocation9 + $0x110] sm:$0xff]
          %v659 = vld [vmem:[#allocation9 + $0x118] sm:$0xff]
          %v660 = vld [vmem:[#allocation9 + $0x120] sm:$0xff]
          %v661 = vld [vmem:[#allocation9 + $0x128] sm:$0xff]
          %v662 = vld [vmem:[#allocation9 + $0x130] sm:$0xff]
          %v663 = vld [vmem:[#allocation9 + $0x138] sm:$0xff]
          %v664 = vld [vmem:[#allocation9 + $0x140] sm:$0xff]
          %v665 = vld [vmem:[#allocation9 + $0x148] sm:$0xff]
          %v666 = vld [vmem:[#allocation9 + $0x150] sm:$0xff]
          %v667 = vld [vmem:[#allocation9 + $0x158] sm:$0xff]
          %v668 = vld [vmem:[#allocation9 + $0x160] sm:$0xff]
          %v669 = vld [vmem:[#allocation9 + $0x168] sm:$0xff]
          %v670 = vld [vmem:[#allocation9 + $0x170] sm:$0xff]
          %v671 = vld [vmem:[#allocation9 + $0x178] sm:$0xff]
          %v672 = vld [vmem:[#allocation9 + $0x180] sm:$0xff]
          %v673 = vld [vmem:[#allocation9 + $0x188] sm:$0xff]
          %v674 = vld [vmem:[#allocation9 + $0x190] sm:$0xff]
          %v675 = vld [vmem:[#allocation9 + $0x198] sm:$0xff]
          %v676 = vld [vmem:[#allocation9 + $0x1a0] sm:$0xff]
          %v677 = vld [vmem:[#allocation9 + $0x1a8] sm:$0xff]
          %v678 = vld [vmem:[#allocation9 + $0x1b0] sm:$0xff]
          %v679 = vld [vmem:[#allocation9 + $0x1b8] sm:$0xff]
          %v680 = vld [vmem:[#allocation9 + $0x1c0] sm:$0xff]
          %v681 = vld [vmem:[#allocation9 + $0x1c8] sm:$0xff]
          %v682 = vld [vmem:[#allocation9 + $0x1d0] sm:$0xff]
          %v683 = vld [vmem:[#allocation9 + $0x1d8] sm:$0xff]
          %v684 = vld [vmem:[#allocation9 + $0x1e0] sm:$0xff]
          %v685 = vld [vmem:[#allocation9 + $0x1e8] sm:$0xff]
          %v686 = vld [vmem:[#allocation9 + $0x1f0] sm:$0xff]
          %v687 = vld [vmem:[#allocation9 + $0x1f8] sm:$0xff]
          %689 = vset.pattern.permute.xlu0 0
          %690 = vperm.xlu0 %689, %v624
          %v691 = vpop.permute.xlu0 %690
          %694 = vset.pattern.permute.xlu0 0
          %695 = vperm.xlu0 %694, %v625
          %v696 = vpop.permute.xlu0 %695
          %699 = vset.pattern.permute.xlu0 0
          %700 = vperm.xlu0 %699, %v626
          %v701 = vpop.permute.xlu0 %700
          %704 = vset.pattern.permute.xlu0 0
          %705 = vperm.xlu0 %704, %v627
          %v706 = vpop.permute.xlu0 %705
          %709 = vset.pattern.permute.xlu0 0
          %710 = vperm.xlu0 %709, %v628
          %v711 = vpop.permute.xlu0 %710
          %714 = vset.pattern.permute.xlu0 0
          %715 = vperm.xlu0 %714, %v629
          %v716 = vpop.permute.xlu0 %715
          %719 = vset.pattern.permute.xlu0 0
          %720 = vperm.xlu0 %719, %v630
          %v721 = vpop.permute.xlu0 %720
          %724 = vset.pattern.permute.xlu0 0
          %725 = vperm.xlu0 %724, %v631
          %v726 = vpop.permute.xlu0 %725
          %729 = vset.pattern.permute.xlu0 0
          %730 = vperm.xlu0 %729, %v632
          %v731 = vpop.permute.xlu0 %730
          %734 = vset.pattern.permute.xlu0 0
          %735 = vperm.xlu0 %734, %v633
          %v736 = vpop.permute.xlu0 %735
          %739 = vset.pattern.permute.xlu0 0
          %740 = vperm.xlu0 %739, %v634
          %v741 = vpop.permute.xlu0 %740
          %744 = vset.pattern.permute.xlu0 0
          %745 = vperm.xlu0 %744, %v635
          %v746 = vpop.permute.xlu0 %745
          %749 = vset.pattern.permute.xlu0 0
          %750 = vperm.xlu0 %749, %v636
          %v751 = vpop.permute.xlu0 %750
          %754 = vset.pattern.permute.xlu0 0
          %755 = vperm.xlu0 %754, %v637
          %v756 = vpop.permute.xlu0 %755
          %759 = vset.pattern.permute.xlu0 0
          %760 = vperm.xlu0 %759, %v638
          %v761 = vpop.permute.xlu0 %760
          %764 = vset.pattern.permute.xlu0 0
          %765 = vperm.xlu0 %764, %v639
          %v766 = vpop.permute.xlu0 %765
          %769 = vset.pattern.permute.xlu0 0
          %770 = vperm.xlu0 %769, %v640
          %v771 = vpop.permute.xlu0 %770
          %774 = vset.pattern.permute.xlu0 0
          %775 = vperm.xlu0 %774, %v641
          %v776 = vpop.permute.xlu0 %775
          %779 = vset.pattern.permute.xlu0 0
          %780 = vperm.xlu0 %779, %v642
          %v781 = vpop.permute.xlu0 %780
          %784 = vset.pattern.permute.xlu0 0
          %785 = vperm.xlu0 %784, %v643
          %v786 = vpop.permute.xlu0 %785
          %789 = vset.pattern.permute.xlu0 0
          %790 = vperm.xlu0 %789, %v644
          %v791 = vpop.permute.xlu0 %790
          %794 = vset.pattern.permute.xlu0 0
          %795 = vperm.xlu0 %794, %v645
          %v796 = vpop.permute.xlu0 %795
          %799 = vset.pattern.permute.xlu0 0
          %800 = vperm.xlu0 %799, %v646
          %v801 = vpop.permute.xlu0 %800
          %804 = vset.pattern.permute.xlu0 0
          %805 = vperm.xlu0 %804, %v647
          %v806 = vpop.permute.xlu0 %805
          %809 = vset.pattern.permute.xlu0 0
          %810 = vperm.xlu0 %809, %v648
          %v811 = vpop.permute.xlu0 %810
          %814 = vset.pattern.permute.xlu0 0
          %815 = vperm.xlu0 %814, %v649
          %v816 = vpop.permute.xlu0 %815
          %819 = vset.pattern.permute.xlu0 0
          %820 = vperm.xlu0 %819, %v650
          %v821 = vpop.permute.xlu0 %820
          %824 = vset.pattern.permute.xlu0 0
          %825 = vperm.xlu0 %824, %v651
          %v826 = vpop.permute.xlu0 %825
          %829 = vset.pattern.permute.xlu0 0
          %830 = vperm.xlu0 %829, %v652
          %v831 = vpop.permute.xlu0 %830
          %834 = vset.pattern.permute.xlu0 0
          %835 = vperm.xlu0 %834, %v653
          %v836 = vpop.permute.xlu0 %835
          %839 = vset.pattern.permute.xlu0 0
          %840 = vperm.xlu0 %839, %v654
          %v841 = vpop.permute.xlu0 %840
          %844 = vset.pattern.permute.xlu0 0
          %845 = vperm.xlu0 %844, %v655
          %v846 = vpop.permute.xlu0 %845
          %849 = vset.pattern.permute.xlu0 0
          %850 = vperm.xlu0 %849, %v656
          %v851 = vpop.permute.xlu0 %850
          %854 = vset.pattern.permute.xlu0 0
          %855 = vperm.xlu0 %854, %v657
          %v856 = vpop.permute.xlu0 %855
          %859 = vset.pattern.permute.xlu0 0
          %860 = vperm.xlu0 %859, %v658
          %v861 = vpop.permute.xlu0 %860
          %864 = vset.pattern.permute.xlu0 0
          %865 = vperm.xlu0 %864, %v659
          %v866 = vpop.permute.xlu0 %865
          %869 = vset.pattern.permute.xlu0 0
          %870 = vperm.xlu0 %869, %v660
          %v871 = vpop.permute.xlu0 %870
          %874 = vset.pattern.permute.xlu0 0
          %875 = vperm.xlu0 %874, %v661
          %v876 = vpop.permute.xlu0 %875
          %879 = vset.pattern.permute.xlu0 0
          %880 = vperm.xlu0 %879, %v662
          %v881 = vpop.permute.xlu0 %880
          %884 = vset.pattern.permute.xlu0 0
          %885 = vperm.xlu0 %884, %v663
          %v886 = vpop.permute.xlu0 %885
          %889 = vset.pattern.permute.xlu0 0
          %890 = vperm.xlu0 %889, %v664
          %v891 = vpop.permute.xlu0 %890
          %894 = vset.pattern.permute.xlu0 0
          %895 = vperm.xlu0 %894, %v665
          %v896 = vpop.permute.xlu0 %895
          %899 = vset.pattern.permute.xlu0 0
          %900 = vperm.xlu0 %899, %v666
          %v901 = vpop.permute.xlu0 %900
          %904 = vset.pattern.permute.xlu0 0
          %905 = vperm.xlu0 %904, %v667
          %v906 = vpop.permute.xlu0 %905
          %909 = vset.pattern.permute.xlu0 0
          %910 = vperm.xlu0 %909, %v668
          %v911 = vpop.permute.xlu0 %910
          %914 = vset.pattern.permute.xlu0 0
          %915 = vperm.xlu0 %914, %v669
          %v916 = vpop.permute.xlu0 %915
          %919 = vset.pattern.permute.xlu0 0
          %920 = vperm.xlu0 %919, %v670
          %v921 = vpop.permute.xlu0 %920
          %924 = vset.pattern.permute.xlu0 0
          %925 = vperm.xlu0 %924, %v671
          %v926 = vpop.permute.xlu0 %925
          %929 = vset.pattern.permute.xlu0 0
          %930 = vperm.xlu0 %929, %v672
          %v931 = vpop.permute.xlu0 %930
          %934 = vset.pattern.permute.xlu0 0
          %935 = vperm.xlu0 %934, %v673
          %v936 = vpop.permute.xlu0 %935
          %939 = vset.pattern.permute.xlu0 0
          %940 = vperm.xlu0 %939, %v674
          %v941 = vpop.permute.xlu0 %940
          %944 = vset.pattern.permute.xlu0 0
          %945 = vperm.xlu0 %944, %v675
          %v946 = vpop.permute.xlu0 %945
          %949 = vset.pattern.permute.xlu0 0
          %950 = vperm.xlu0 %949, %v676
          %v951 = vpop.permute.xlu0 %950
          %954 = vset.pattern.permute.xlu0 0
          %955 = vperm.xlu0 %954, %v677
          %v956 = vpop.permute.xlu0 %955
          %959 = vset.pattern.permute.xlu0 0
          %960 = vperm.xlu0 %959, %v678
          %v961 = vpop.permute.xlu0 %960
          %964 = vset.pattern.permute.xlu0 0
          %965 = vperm.xlu0 %964, %v679
          %v966 = vpop.permute.xlu0 %965
          %969 = vset.pattern.permute.xlu0 0
          %970 = vperm.xlu0 %969, %v680
          %v971 = vpop.permute.xlu0 %970
          %974 = vset.pattern.permute.xlu0 0
          %975 = vperm.xlu0 %974, %v681
          %v976 = vpop.permute.xlu0 %975
          %979 = vset.pattern.permute.xlu0 0
          %980 = vperm.xlu0 %979, %v682
          %v981 = vpop.permute.xlu0 %980
          %984 = vset.pattern.permute.xlu0 0
          %985 = vperm.xlu0 %984, %v683
          %v986 = vpop.permute.xlu0 %985
          %989 = vset.pattern.permute.xlu0 0
          %990 = vperm.xlu0 %989, %v684
          %v991 = vpop.permute.xlu0 %990
          %994 = vset.pattern.permute.xlu0 0
          %995 = vperm.xlu0 %994, %v685
          %v996 = vpop.permute.xlu0 %995
          %999 = vset.pattern.permute.xlu0 0
          %1000 = vperm.xlu0 %999, %v686
          %v1001 = vpop.permute.xlu0 %1000
          %1004 = vset.pattern.permute.xlu0 0
          %1005 = vperm.xlu0 %1004, %v687
          %v1006 = vpop.permute.xlu0 %1005
          %v1072 = vunpack.c.l.b16 %v560
          %v1073 = vunpack.c.l.b16 %v561
          %v1074 = vunpack.c.l.b16 %v562
          %v1075 = vunpack.c.l.b16 %v563
          %v1076 = vunpack.c.l.b16 %v564
          %v1077 = vunpack.c.l.b16 %v565
          %v1078 = vunpack.c.l.b16 %v566
          %v1079 = vunpack.c.l.b16 %v567
          %v1080 = vunpack.c.l.b16 %v568
          %v1081 = vunpack.c.l.b16 %v569
          %v1082 = vunpack.c.l.b16 %v570
          %v1083 = vunpack.c.l.b16 %v571
          %v1084 = vunpack.c.l.b16 %v572
          %v1085 = vunpack.c.l.b16 %v573
          %v1086 = vunpack.c.l.b16 %v574
          %v1087 = vunpack.c.l.b16 %v575
          %v1088 = vunpack.c.l.b16 %v576
          %v1089 = vunpack.c.l.b16 %v577
          %v1090 = vunpack.c.l.b16 %v578
          %v1091 = vunpack.c.l.b16 %v579
          %v1092 = vunpack.c.l.b16 %v580
          %v1093 = vunpack.c.l.b16 %v581
          %v1094 = vunpack.c.l.b16 %v582
          %v1095 = vunpack.c.l.b16 %v583
          %v1096 = vunpack.c.l.b16 %v584
          %v1097 = vunpack.c.l.b16 %v585
          %v1098 = vunpack.c.l.b16 %v586
          %v1099 = vunpack.c.l.b16 %v587
          %v1100 = vunpack.c.l.b16 %v588
          %v1101 = vunpack.c.l.b16 %v589
          %v1102 = vunpack.c.l.b16 %v590
          %v1103 = vunpack.c.l.b16 %v591
          %v1104 = vunpack.c.l.b16 %v592
          %v1105 = vunpack.c.l.b16 %v593
          %v1106 = vunpack.c.l.b16 %v594
          %v1107 = vunpack.c.l.b16 %v595
          %v1108 = vunpack.c.l.b16 %v596
          %v1109 = vunpack.c.l.b16 %v597
          %v1110 = vunpack.c.l.b16 %v598
          %v1111 = vunpack.c.l.b16 %v599
          %v1112 = vunpack.c.l.b16 %v600
          %v1113 = vunpack.c.l.b16 %v601
          %v1114 = vunpack.c.l.b16 %v602
          %v1115 = vunpack.c.l.b16 %v603
          %v1116 = vunpack.c.l.b16 %v604
          %v1117 = vunpack.c.l.b16 %v605
          %v1118 = vunpack.c.l.b16 %v606
          %v1119 = vunpack.c.l.b16 %v607
          %v1120 = vunpack.c.l.b16 %v608
          %v1121 = vunpack.c.l.b16 %v609
          %v1122 = vunpack.c.l.b16 %v610
          %v1123 = vunpack.c.l.b16 %v611
          %v1124 = vunpack.c.l.b16 %v612
          %v1125 = vunpack.c.l.b16 %v613
          %v1126 = vunpack.c.l.b16 %v614
          %v1127 = vunpack.c.l.b16 %v615
          %v1128 = vunpack.c.l.b16 %v616
          %v1129 = vunpack.c.l.b16 %v617
          %v1130 = vunpack.c.l.b16 %v618
          %v1131 = vunpack.c.l.b16 %v619
          %v1132 = vunpack.c.l.b16 %v620
          %v1133 = vunpack.c.l.b16 %v621
          %v1134 = vunpack.c.l.b16 %v622
          %v1135 = vunpack.c.l.b16 %v623
          %v1136 = vpack.c.b16 %v1073, %v1072
          %v1137 = vpack.c.b16 %v1075, %v1074
          %v1138 = vpack.c.b16 %v1077, %v1076
          %v1139 = vpack.c.b16 %v1079, %v1078
          %v1140 = vpack.c.b16 %v1081, %v1080
          %v1141 = vpack.c.b16 %v1083, %v1082
          %v1142 = vpack.c.b16 %v1085, %v1084
          %v1143 = vpack.c.b16 %v1087, %v1086
          %v1144 = vpack.c.b16 %v1089, %v1088
          %v1145 = vpack.c.b16 %v1091, %v1090
          %v1146 = vpack.c.b16 %v1093, %v1092
          %v1147 = vpack.c.b16 %v1095, %v1094
          %v1148 = vpack.c.b16 %v1097, %v1096
          %v1149 = vpack.c.b16 %v1099, %v1098
          %v1150 = vpack.c.b16 %v1101, %v1100
          %v1151 = vpack.c.b16 %v1103, %v1102
          %v1152 = vpack.c.b16 %v1105, %v1104
          %v1153 = vpack.c.b16 %v1107, %v1106
          %v1154 = vpack.c.b16 %v1109, %v1108
          %v1155 = vpack.c.b16 %v1111, %v1110
          %v1156 = vpack.c.b16 %v1113, %v1112
          %v1157 = vpack.c.b16 %v1115, %v1114
          %v1158 = vpack.c.b16 %v1117, %v1116
          %v1159 = vpack.c.b16 %v1119, %v1118
          %v1160 = vpack.c.b16 %v1121, %v1120
          %v1161 = vpack.c.b16 %v1123, %v1122
          %v1162 = vpack.c.b16 %v1125, %v1124
          %v1163 = vpack.c.b16 %v1127, %v1126
          %v1164 = vpack.c.b16 %v1129, %v1128
          %v1165 = vpack.c.b16 %v1131, %v1130
          %v1166 = vpack.c.b16 %v1133, %v1132
          %v1167 = vpack.c.b16 %v1135, %v1134
          %v1216 = vunpack.c.l.b16 %v518
          %v1217 = vunpack.c.l.b16 %v519
          %v1218 = vunpack.c.l.b16 %v520
          %v1219 = vunpack.c.l.b16 %v521
          %v1220 = vunpack.c.l.b16 %v522
          %v1221 = vunpack.c.l.b16 %v523
          %v1222 = vunpack.c.l.b16 %v524
          %v1223 = vunpack.c.l.b16 %v525
          %v1224 = vunpack.c.l.b16 %v526
          %v1225 = vunpack.c.l.b16 %v527
          %v1226 = vunpack.c.l.b16 %v528
          %v1227 = vunpack.c.l.b16 %v529
          %v1228 = vunpack.c.l.b16 %v530
          %v1229 = vunpack.c.l.b16 %v531
          %v1230 = vunpack.c.l.b16 %v532
          %v1231 = vunpack.c.l.b16 %v533
          %v1232 = vpack.c.b16 %v1217, %v1216
          %v1233 = vpack.c.b16 %v1219, %v1218
          %v1234 = vpack.c.b16 %v1221, %v1220
          %v1235 = vpack.c.b16 %v1223, %v1222
          %v1236 = vpack.c.b16 %v1225, %v1224
          %v1237 = vpack.c.b16 %v1227, %v1226
          %v1238 = vpack.c.b16 %v1229, %v1228
          %v1239 = vpack.c.b16 %v1231, %v1230
          %1248 = vmatprep.subr.bf16.mxu0 0
          %1249 = vmatpush1.bf16.msra.mxu0 %v1232
          %1250 = vmatprep.subr.bf16.mxu0 0
          %1251 = vmatpush1.bf16.msra.mxu0 %v1233
          %1252 = vmatprep.subr.bf16.mxu0 0
          %1253 = vmatpush1.bf16.msra.mxu0 %v1234
          %1254 = vmatprep.subr.bf16.mxu0 0
          %1255 = vmatpush1.bf16.msra.mxu0 %v1235
          %1256 = vmatprep.subr.bf16.mxu0 0
          %1257 = vmatpush1.bf16.msra.mxu0 %v1236
          %1258 = vmatprep.subr.bf16.mxu0 0
          %1259 = vmatpush1.bf16.msra.mxu0 %v1237
          %1260 = vmatprep.subr.bf16.mxu0 0
          %1261 = vmatpush1.bf16.msra.mxu0 %v1238
          %1262 = vmatprep.subr.bf16.mxu0 0
          %1263 = vmatpush1.bf16.msra.mxu0 %v1239
          %1264 = vmatprep.subr.bf16.mxu0 0
          %1265 = vmatpush1.bf16.msra.mxu0 0
          %1266 = vmatprep.subr.bf16.mxu0 0
          %1267 = vmatpush1.bf16.msra.mxu0 0
          %1268 = vmatprep.subr.bf16.mxu0 0
          %1269 = vmatpush1.bf16.msra.mxu0 0
          %1270 = vmatprep.subr.bf16.mxu0 0
          %1271 = vmatpush1.bf16.msra.mxu0 0
          %1272 = vmatprep.subr.bf16.mxu0 0
          %1273 = vmatpush1.bf16.msra.mxu0 0
          %1274 = vmatprep.subr.bf16.mxu0 0
          %1275 = vmatpush1.bf16.msra.mxu0 0
          %1276 = vmatprep.subr.bf16.mxu0 0
          %1277 = vmatpush1.bf16.msra.mxu0 0
          %1278 = vmatprep.subr.bf16.mxu0 0
          %1279 = vmatpush1.bf16.msra.mxu0 0
          %1280 = vmatprep.mubr.bf16.mxu0 0
          %1281 = vmatmul.mubr.bf16.gmra.mrb[0].mxu0 %v1136
          %v1282 = vpop.f32.mrb[0].mxu0
          %v1283 = vadd.f32 %v691, %v1282
          %v1284 = vpop.f32.mrb[0].mxu0
          %v1285 = vpop.f32.mrb[0].mxu0
          %v1286 = vadd.f32 %v696, %v1285
          %v1287 = vpop.f32.mrb[0].mxu0
          %1288 = vmatprep.mubr.bf16.mxu0 0
          %1289 = vmatmul.mubr.bf16.gmra.mrb[0].mxu0 %v1137
          %v1290 = vpop.f32.mrb[0].mxu0
          %v1291 = vadd.f32 %v701, %v1290
          %v1292 = vpop.f32.mrb[0].mxu0
          %v1293 = vpop.f32.mrb[0].mxu0
          %v1294 = vadd.f32 %v706, %v1293
          %v1295 = vpop.f32.mrb[0].mxu0
          %1296 = vmatprep.mubr.bf16.mxu0 0
          %1297 = vmatmul.mubr.bf16.gmra.mrb[0].mxu0 %v1138
          %v1298 = vpop.f32.mrb[0].mxu0
          %v1299 = vadd.f32 %v711, %v1298
          %v1300 = vpop.f32.mrb[0].mxu0
          %v1301 = vpop.f32.mrb[0].mxu0
          %v1302 = vadd.f32 %v716, %v1301
          %v1303 = vpop.f32.mrb[0].mxu0
          %1304 = vmatprep.mubr.bf16.mxu0 0
          %1305 = vmatmul.mubr.bf16.gmra.mrb[0].mxu0 %v1139
          %v1306 = vpop.f32.mrb[0].mxu0
          %v1307 = vadd.f32 %v721, %v1306
          %v1308 = vpop.f32.mrb[0].mxu0
          %v1309 = vpop.f32.mrb[0].mxu0
          %v1310 = vadd.f32 %v726, %v1309
          %v1311 = vpop.f32.mrb[0].mxu0
          %1312 = vmatprep.mubr.bf16.mxu0 0
          %1313 = vmatmul.mubr.bf16.gmra.mrb[0].mxu0 %v1140
          %v1314 = vpop.f32.mrb[0].mxu0
          %v1315 = vadd.f32 %v731, %v1314
          %v1316 = vpop.f32.mrb[0].mxu0
          %v1317 = vpop.f32.mrb[0].mxu0
          %v1318 = vadd.f32 %v736, %v1317
          %v1319 = vpop.f32.mrb[0].mxu0
          %1320 = vmatprep.mubr.bf16.mxu0 0
          %1321 = vmatmul.mubr.bf16.gmra.mrb[0].mxu0 %v1141
          %v1322 = vpop.f32.mrb[0].mxu0
          %v1323 = vadd.f32 %v741, %v1322
          %v1324 = vpop.f32.mrb[0].mxu0
          %v1325 = vpop.f32.mrb[0].mxu0
          %v1326 = vadd.f32 %v746, %v1325
          %v1327 = vpop.f32.mrb[0].mxu0
          %1328 = vmatprep.mubr.bf16.mxu0 0
          %1329 = vmatmul.mubr.bf16.gmra.mrb[0].mxu0 %v1142
          %v1330 = vpop.f32.mrb[0].mxu0
          %v1331 = vadd.f32 %v751, %v1330
          %v1332 = vpop.f32.mrb[0].mxu0
          %v1333 = vpop.f32.mrb[0].mxu0
          %v1334 = vadd.f32 %v756, %v1333
          %v1335 = vpop.f32.mrb[0].mxu0
          %1336 = vmatprep.mubr.bf16.mxu0 0
          %1337 = vmatmul.mubr.bf16.gmra.mrb[0].mxu0 %v1143
          %v1338 = vpop.f32.mrb[0].mxu0
          %v1339 = vadd.f32 %v761, %v1338
          %v1340 = vpop.f32.mrb[0].mxu0
          %v1341 = vpop.f32.mrb[0].mxu0
          %v1342 = vadd.f32 %v766, %v1341
          %v1343 = vpop.f32.mrb[0].mxu0
          %1344 = vmatprep.mubr.bf16.mxu0 0
          %1345 = vmatmul.mubr.bf16.gmra.mrb[0].mxu0 %v1144
          %v1346 = vpop.f32.mrb[0].mxu0
          %v1347 = vadd.f32 %v771, %v1346
          %v1348 = vpop.f32.mrb[0].mxu0
          %v1349 = vpop.f32.mrb[0].mxu0
          %v1350 = vadd.f32 %v776, %v1349
          %v1351 = vpop.f32.mrb[0].mxu0
          %1352 = vmatprep.mubr.bf16.mxu0 0
          %1353 = vmatmul.mubr.bf16.gmra.mrb[0].mxu0 %v1145
          %v1354 = vpop.f32.mrb[0].mxu0
          %v1355 = vadd.f32 %v781, %v1354
          %v1356 = vpop.f32.mrb[0].mxu0
          %v1357 = vpop.f32.mrb[0].mxu0
          %v1358 = vadd.f32 %v786, %v1357
          %v1359 = vpop.f32.mrb[0].mxu0
          %1360 = vmatprep.mubr.bf16.mxu0 0
          %1361 = vmatmul.mubr.bf16.gmra.mrb[0].mxu0 %v1146
          %v1362 = vpop.f32.mrb[0].mxu0
          %v1363 = vadd.f32 %v791, %v1362
          %v1364 = vpop.f32.mrb[0].mxu0
          %v1365 = vpop.f32.mrb[0].mxu0
          %v1366 = vadd.f32 %v796, %v1365
          %v1367 = vpop.f32.mrb[0].mxu0
          %1368 = vmatprep.mubr.bf16.mxu0 0
          %1369 = vmatmul.mubr.bf16.gmra.mrb[0].mxu0 %v1147
          %v1370 = vpop.f32.mrb[0].mxu0
          %v1371 = vadd.f32 %v801, %v1370
          %v1372 = vpop.f32.mrb[0].mxu0
          %v1373 = vpop.f32.mrb[0].mxu0
          %v1374 = vadd.f32 %v806, %v1373
          %v1375 = vpop.f32.mrb[0].mxu0
          %1376 = vmatprep.mubr.bf16.mxu0 0
          %1377 = vmatmul.mubr.bf16.gmra.mrb[0].mxu0 %v1148
          %v1378 = vpop.f32.mrb[0].mxu0
          %v1379 = vadd.f32 %v811, %v1378
          %v1380 = vpop.f32.mrb[0].mxu0
          %v1381 = vpop.f32.mrb[0].mxu0
          %v1382 = vadd.f32 %v816, %v1381
          %v1383 = vpop.f32.mrb[0].mxu0
          %1384 = vmatprep.mubr.bf16.mxu0 0
          %1385 = vmatmul.mubr.bf16.gmra.mrb[0].mxu0 %v1149
          %v1386 = vpop.f32.mrb[0].mxu0
          %v1387 = vadd.f32 %v821, %v1386
          %v1388 = vpop.f32.mrb[0].mxu0
          %v1389 = vpop.f32.mrb[0].mxu0
          %v1390 = vadd.f32 %v826, %v1389
          %v1391 = vpop.f32.mrb[0].mxu0
          %1392 = vmatprep.mubr.bf16.mxu0 0
          %1393 = vmatmul.mubr.bf16.gmra.mrb[0].mxu0 %v1150
          %v1394 = vpop.f32.mrb[0].mxu0
          %v1395 = vadd.f32 %v831, %v1394
          %v1396 = vpop.f32.mrb[0].mxu0
          %v1397 = vpop.f32.mrb[0].mxu0
          %v1398 = vadd.f32 %v836, %v1397
          %v1399 = vpop.f32.mrb[0].mxu0
          %1400 = vmatprep.mubr.bf16.mxu0 0
          %1401 = vmatmul.mubr.bf16.gmra.mrb[0].mxu0 %v1151
          %v1402 = vpop.f32.mrb[0].mxu0
          %v1403 = vadd.f32 %v841, %v1402
          %v1404 = vpop.f32.mrb[0].mxu0
          %v1405 = vpop.f32.mrb[0].mxu0
          %v1406 = vadd.f32 %v846, %v1405
          %v1407 = vpop.f32.mrb[0].mxu0
          %1408 = vmatprep.mubr.bf16.mxu0 0
          %1409 = vmatmul.mubr.bf16.gmra.mrb[0].mxu0 %v1152
          %v1410 = vpop.f32.mrb[0].mxu0
          %v1411 = vadd.f32 %v851, %v1410
          %v1412 = vpop.f32.mrb[0].mxu0
          %v1413 = vpop.f32.mrb[0].mxu0
          %v1414 = vadd.f32 %v856, %v1413
          %v1415 = vpop.f32.mrb[0].mxu0
          %1416 = vmatprep.mubr.bf16.mxu0 0
          %1417 = vmatmul.mubr.bf16.gmra.mrb[0].mxu0 %v1153
          %v1418 = vpop.f32.mrb[0].mxu0
          %v1419 = vadd.f32 %v861, %v1418
          %v1420 = vpop.f32.mrb[0].mxu0
          %v1421 = vpop.f32.mrb[0].mxu0
          %v1422 = vadd.f32 %v866, %v1421
          %v1423 = vpop.f32.mrb[0].mxu0
          %1424 = vmatprep.mubr.bf16.mxu0 0
          %1425 = vmatmul.mubr.bf16.gmra.mrb[0].mxu0 %v1154
          %v1426 = vpop.f32.mrb[0].mxu0
          %v1427 = vadd.f32 %v871, %v1426
          %v1428 = vpop.f32.mrb[0].mxu0
          %v1429 = vpop.f32.mrb[0].mxu0
          %v1430 = vadd.f32 %v876, %v1429
          %v1431 = vpop.f32.mrb[0].mxu0
          %1432 = vmatprep.mubr.bf16.mxu0 0
          %1433 = vmatmul.mubr.bf16.gmra.mrb[0].mxu0 %v1155
          %v1434 = vpop.f32.mrb[0].mxu0
          %v1435 = vadd.f32 %v881, %v1434
          %v1436 = vpop.f32.mrb[0].mxu0
          %v1437 = vpop.f32.mrb[0].mxu0
          %v1438 = vadd.f32 %v886, %v1437
          %v1439 = vpop.f32.mrb[0].mxu0
          %1440 = vmatprep.mubr.bf16.mxu0 0
          %1441 = vmatmul.mubr.bf16.gmra.mrb[0].mxu0 %v1156
          %v1442 = vpop.f32.mrb[0].mxu0
          %v1443 = vadd.f32 %v891, %v1442
          %v1444 = vpop.f32.mrb[0].mxu0
          %v1445 = vpop.f32.mrb[0].mxu0
          %v1446 = vadd.f32 %v896, %v1445
          %v1447 = vpop.f32.mrb[0].mxu0
          %1448 = vmatprep.mubr.bf16.mxu0 0
          %1449 = vmatmul.mubr.bf16.gmra.mrb[0].mxu0 %v1157
          %v1450 = vpop.f32.mrb[0].mxu0
          %v1451 = vadd.f32 %v901, %v1450
          %v1452 = vpop.f32.mrb[0].mxu0
          %v1453 = vpop.f32.mrb[0].mxu0
          %v1454 = vadd.f32 %v906, %v1453
          %v1455 = vpop.f32.mrb[0].mxu0
          %1456 = vmatprep.mubr.bf16.mxu0 0
          %1457 = vmatmul.mubr.bf16.gmra.mrb[0].mxu0 %v1158
          %v1458 = vpop.f32.mrb[0].mxu0
          %v1459 = vadd.f32 %v911, %v1458
          %v1460 = vpop.f32.mrb[0].mxu0
          %v1461 = vpop.f32.mrb[0].mxu0
          %v1462 = vadd.f32 %v916, %v1461
          %v1463 = vpop.f32.mrb[0].mxu0
          %1464 = vmatprep.mubr.bf16.mxu0 0
          %1465 = vmatmul.mubr.bf16.gmra.mrb[0].mxu0 %v1159
          %v1466 = vpop.f32.mrb[0].mxu0
          %v1467 = vadd.f32 %v921, %v1466
          %v1468 = vpop.f32.mrb[0].mxu0
          %v1469 = vpop.f32.mrb[0].mxu0
          %v1470 = vadd.f32 %v926, %v1469
          %v1471 = vpop.f32.mrb[0].mxu0
          %1472 = vmatprep.mubr.bf16.mxu0 0
          %1473 = vmatmul.mubr.bf16.gmra.mrb[0].mxu0 %v1160
          %v1474 = vpop.f32.mrb[0].mxu0
          %v1475 = vadd.f32 %v931, %v1474
          %v1476 = vpop.f32.mrb[0].mxu0
          %v1477 = vpop.f32.mrb[0].mxu0
          %v1478 = vadd.f32 %v936, %v1477
          %v1479 = vpop.f32.mrb[0].mxu0
          %1480 = vmatprep.mubr.bf16.mxu0 0
          %1481 = vmatmul.mubr.bf16.gmra.mrb[0].mxu0 %v1161
          %v1482 = vpop.f32.mrb[0].mxu0
          %v1483 = vadd.f32 %v941, %v1482
          %v1484 = vpop.f32.mrb[0].mxu0
          %v1485 = vpop.f32.mrb[0].mxu0
          %v1486 = vadd.f32 %v946, %v1485
          %v1487 = vpop.f32.mrb[0].mxu0
          %1488 = vmatprep.mubr.bf16.mxu0 0
          %1489 = vmatmul.mubr.bf16.gmra.mrb[0].mxu0 %v1162
          %v1490 = vpop.f32.mrb[0].mxu0
          %v1491 = vadd.f32 %v951, %v1490
          %v1492 = vpop.f32.mrb[0].mxu0
          %v1493 = vpop.f32.mrb[0].mxu0
          %v1494 = vadd.f32 %v956, %v1493
          %v1495 = vpop.f32.mrb[0].mxu0
          %1496 = vmatprep.mubr.bf16.mxu0 0
          %1497 = vmatmul.mubr.bf16.gmra.mrb[0].mxu0 %v1163
          %v1498 = vpop.f32.mrb[0].mxu0
          %v1499 = vadd.f32 %v961, %v1498
          %v1500 = vpop.f32.mrb[0].mxu0
          %v1501 = vpop.f32.mrb[0].mxu0
          %v1502 = vadd.f32 %v966, %v1501
          %v1503 = vpop.f32.mrb[0].mxu0
          %1504 = vmatprep.mubr.bf16.mxu0 0
          %1505 = vmatmul.mubr.bf16.gmra.mrb[0].mxu0 %v1164
          %v1506 = vpop.f32.mrb[0].mxu0
          %v1507 = vadd.f32 %v971, %v1506
          %v1508 = vpop.f32.mrb[0].mxu0
          %v1509 = vpop.f32.mrb[0].mxu0
          %v1510 = vadd.f32 %v976, %v1509
          %v1511 = vpop.f32.mrb[0].mxu0
          %1512 = vmatprep.mubr.bf16.mxu0 0
          %1513 = vmatmul.mubr.bf16.gmra.mrb[0].mxu0 %v1165
          %v1514 = vpop.f32.mrb[0].mxu0
          %v1515 = vadd.f32 %v981, %v1514
          %v1516 = vpop.f32.mrb[0].mxu0
          %v1517 = vpop.f32.mrb[0].mxu0
          %v1518 = vadd.f32 %v986, %v1517
          %v1519 = vpop.f32.mrb[0].mxu0
          %1520 = vmatprep.mubr.bf16.mxu0 0
          %1521 = vmatmul.mubr.bf16.gmra.mrb[0].mxu0 %v1166
          %v1522 = vpop.f32.mrb[0].mxu0
          %v1523 = vadd.f32 %v991, %v1522
          %v1524 = vpop.f32.mrb[0].mxu0
          %v1525 = vpop.f32.mrb[0].mxu0
          %v1526 = vadd.f32 %v996, %v1525
          %v1527 = vpop.f32.mrb[0].mxu0
          %1528 = vmatprep.mubr.bf16.mxu0 0
          %1529 = vmatmul.mubr.bf16.gmra.mrb[0].mxu0 %v1167
          %v1530 = vpop.f32.mrb[0].mxu0
          %v1531 = vadd.f32 %v1001, %v1530
          %v1532 = vpop.f32.mrb[0].mxu0
          %v1533 = vpop.f32.mrb[0].mxu0
          %v1534 = vadd.f32 %v1006, %v1533
          %v1535 = vpop.f32.mrb[0].mxu0
          %1536 = vdwg.mxu0
          %v1537 = vmax.f32 %v1283, 0.0
          %v1538 = vmax.f32 %v1286, 0.0
          %v1539 = vmax.f32 %v1291, 0.0
          %v1540 = vmax.f32 %v1294, 0.0
          %v1541 = vmax.f32 %v1299, 0.0
          %v1542 = vmax.f32 %v1302, 0.0
          %v1543 = vmax.f32 %v1307, 0.0
          %v1544 = vmax.f32 %v1310, 0.0
          %v1545 = vmax.f32 %v1315, 0.0
          %v1546 = vmax.f32 %v1318, 0.0
          %v1547 = vmax.f32 %v1323, 0.0
          %v1548 = vmax.f32 %v1326, 0.0
          %v1549 = vmax.f32 %v1331, 0.0
          %v1550 = vmax.f32 %v1334, 0.0
          %v1551 = vmax.f32 %v1339, 0.0
          %v1552 = vmax.f32 %v1342, 0.0
          %v1553 = vmax.f32 %v1347, 0.0
          %v1554 = vmax.f32 %v1350, 0.0
          %v1555 = vmax.f32 %v1355, 0.0
          %v1556 = vmax.f32 %v1358, 0.0
          %v1557 = vmax.f32 %v1363, 0.0
          %v1558 = vmax.f32 %v1366, 0.0
          %v1559 = vmax.f32 %v1371, 0.0
          %v1560 = vmax.f32 %v1374, 0.0
          %v1561 = vmax.f32 %v1379, 0.0
          %v1562 = vmax.f32 %v1382, 0.0
          %v1563 = vmax.f32 %v1387, 0.0
          %v1564 = vmax.f32 %v1390, 0.0
          %v1565 = vmax.f32 %v1395, 0.0
          %v1566 = vmax.f32 %v1398, 0.0
          %v1567 = vmax.f32 %v1403, 0.0
          %v1568 = vmax.f32 %v1406, 0.0
          %v1569 = vmax.f32 %v1411, 0.0
          %v1570 = vmax.f32 %v1414, 0.0
          %v1571 = vmax.f32 %v1419, 0.0
          %v1572 = vmax.f32 %v1422, 0.0
          %v1573 = vmax.f32 %v1427, 0.0
          %v1574 = vmax.f32 %v1430, 0.0
          %v1575 = vmax.f32 %v1435, 0.0
          %v1576 = vmax.f32 %v1438, 0.0
          %v1577 = vmax.f32 %v1443, 0.0
          %v1578 = vmax.f32 %v1446, 0.0
          %v1579 = vmax.f32 %v1451, 0.0
          %v1580 = vmax.f32 %v1454, 0.0
          %v1581 = vmax.f32 %v1459, 0.0
          %v1582 = vmax.f32 %v1462, 0.0
          %v1583 = vmax.f32 %v1467, 0.0
          %v1584 = vmax.f32 %v1470, 0.0
          %v1585 = vmax.f32 %v1475, 0.0
          %v1586 = vmax.f32 %v1478, 0.0
          %v1587 = vmax.f32 %v1483, 0.0
          %v1588 = vmax.f32 %v1486, 0.0
          %v1589 = vmax.f32 %v1491, 0.0
          %v1590 = vmax.f32 %v1494, 0.0
          %v1591 = vmax.f32 %v1499, 0.0
          %v1592 = vmax.f32 %v1502, 0.0
          %v1593 = vmax.f32 %v1507, 0.0
          %v1594 = vmax.f32 %v1510, 0.0
          %v1595 = vmax.f32 %v1515, 0.0
          %v1596 = vmax.f32 %v1518, 0.0
          %v1597 = vmax.f32 %v1523, 0.0
          %v1598 = vmax.f32 %v1526, 0.0
          %v1599 = vmax.f32 %v1531, 0.0
          %v1600 = vmax.f32 %v1534, 0.0
          %v1601 = vpack.c.bf16 %v1538, %v1537
          %v1602 = vpack.c.bf16 %v1540, %v1539
          %v1603 = vpack.c.bf16 %v1542, %v1541
          %v1604 = vpack.c.bf16 %v1544, %v1543
          %v1605 = vpack.c.bf16 %v1546, %v1545
          %v1606 = vpack.c.bf16 %v1548, %v1547
          %v1607 = vpack.c.bf16 %v1550, %v1549
          %v1608 = vpack.c.bf16 %v1552, %v1551
          %v1609 = vpack.c.bf16 %v1554, %v1553
          %v1610 = vpack.c.bf16 %v1556, %v1555
          %v1611 = vpack.c.bf16 %v1558, %v1557
          %v1612 = vpack.c.bf16 %v1560, %v1559
          %v1613 = vpack.c.bf16 %v1562, %v1561
          %v1614 = vpack.c.bf16 %v1564, %v1563
          %v1615 = vpack.c.bf16 %v1566, %v1565
          %v1616 = vpack.c.bf16 %v1568, %v1567
          %v1617 = vpack.c.bf16 %v1570, %v1569
          %v1618 = vpack.c.bf16 %v1572, %v1571
          %v1619 = vpack.c.bf16 %v1574, %v1573
          %v1620 = vpack.c.bf16 %v1576, %v1575
          %v1621 = vpack.c.bf16 %v1578, %v1577
          %v1622 = vpack.c.bf16 %v1580, %v1579
          %v1623 = vpack.c.bf16 %v1582, %v1581
          %v1624 = vpack.c.bf16 %v1584, %v1583
          %v1625 = vpack.c.bf16 %v1586, %v1585
          %v1626 = vpack.c.bf16 %v1588, %v1587
          %v1627 = vpack.c.bf16 %v1590, %v1589
          %v1628 = vpack.c.bf16 %v1592, %v1591
          %v1629 = vpack.c.bf16 %v1594, %v1593
          %v1630 = vpack.c.bf16 %v1596, %v1595
          %v1631 = vpack.c.bf16 %v1598, %v1597
          %v1632 = vpack.c.bf16 %v1600, %v1599
          %v1633 = vld [vmem:[#allocation11] sm:$0xff]
          %v1634 = vld [vmem:[#allocation11 + $0x8] sm:$0xff]
          %v1635 = vld [vmem:[#allocation11 + $0x10] sm:$0xff]
          %v1636 = vld [vmem:[#allocation11 + $0x18] sm:$0xff]
          %v1637 = vld [vmem:[#allocation11 + $0x20] sm:$0xff]
          %v1638 = vld [vmem:[#allocation11 + $0x28] sm:$0xff]
          %v1639 = vld [vmem:[#allocation11 + $0x30] sm:$0xff]
          %v1640 = vld [vmem:[#allocation11 + $0x38] sm:$0xff]
          %v1641 = vld [vmem:[#allocation11 + $0x40] sm:$0xff]
          %v1642 = vld [vmem:[#allocation11 + $0x48] sm:$0xff]
          %v1643 = vld [vmem:[#allocation11 + $0x50] sm:$0xff]
          %v1644 = vld [vmem:[#allocation11 + $0x58] sm:$0xff]
          %v1645 = vld [vmem:[#allocation11 + $0x60] sm:$0xff]
          %v1646 = vld [vmem:[#allocation11 + $0x68] sm:$0xff]
          %v1647 = vld [vmem:[#allocation11 + $0x70] sm:$0xff]
          %v1648 = vld [vmem:[#allocation11 + $0x78] sm:$0xff]
          %v1649 = vld [vmem:[#allocation11 + $0x80] sm:$0xff]
          %v1650 = vld [vmem:[#allocation11 + $0x88] sm:$0xff]
          %v1651 = vld [vmem:[#allocation11 + $0x90] sm:$0xff]
          %v1652 = vld [vmem:[#allocation11 + $0x98] sm:$0xff]
          %v1653 = vld [vmem:[#allocation11 + $0xa0] sm:$0xff]
          %v1654 = vld [vmem:[#allocation11 + $0xa8] sm:$0xff]
          %v1655 = vld [vmem:[#allocation11 + $0xb0] sm:$0xff]
          %v1656 = vld [vmem:[#allocation11 + $0xb8] sm:$0xff]
          %v1657 = vld [vmem:[#allocation11 + $0xc0] sm:$0xff]
          %v1658 = vld [vmem:[#allocation11 + $0xc8] sm:$0xff]
          %v1659 = vld [vmem:[#allocation11 + $0xd0] sm:$0xff]
          %v1660 = vld [vmem:[#allocation11 + $0xd8] sm:$0xff]
          %v1661 = vld [vmem:[#allocation11 + $0xe0] sm:$0xff]
          %v1662 = vld [vmem:[#allocation11 + $0xe8] sm:$0xff]
          %v1663 = vld [vmem:[#allocation11 + $0xf0] sm:$0xff]
          %v1664 = vld [vmem:[#allocation11 + $0xf8] sm:$0xff]
          %v1665 = vld [vmem:[#allocation12] sm:$0xff]
          %v1666 = vld [vmem:[#allocation12 + $0x8] sm:$0xff]
          %v1667 = vld [vmem:[#allocation12 + $0x10] sm:$0xff]
          %v1668 = vld [vmem:[#allocation12 + $0x18] sm:$0xff]
          %v1669 = vld [vmem:[#allocation12 + $0x20] sm:$0xff]
          %v1670 = vld [vmem:[#allocation12 + $0x28] sm:$0xff]
          %v1671 = vld [vmem:[#allocation12 + $0x30] sm:$0xff]
          %v1672 = vld [vmem:[#allocation12 + $0x38] sm:$0xff]
          %v1673 = vld [vmem:[#allocation12 + $0x40] sm:$0xff]
          %v1674 = vld [vmem:[#allocation12 + $0x48] sm:$0xff]
          %v1675 = vld [vmem:[#allocation12 + $0x50] sm:$0xff]
          %v1676 = vld [vmem:[#allocation12 + $0x58] sm:$0xff]
          %v1677 = vld [vmem:[#allocation12 + $0x60] sm:$0xff]
          %v1678 = vld [vmem:[#allocation12 + $0x68] sm:$0xff]
          %v1679 = vld [vmem:[#allocation12 + $0x70] sm:$0xff]
          %v1680 = vld [vmem:[#allocation12 + $0x78] sm:$0xff]
          %1682 = vset.pattern.permute.xlu0 0
          %1683 = vperm.xlu0 %1682, %v1665
          %v1684 = vpop.permute.xlu0 %1683
          %1687 = vset.pattern.permute.xlu0 0
          %1688 = vperm.xlu0 %1687, %v1666
          %v1689 = vpop.permute.xlu0 %1688
          %1692 = vset.pattern.permute.xlu0 0
          %1693 = vperm.xlu0 %1692, %v1667
          %v1694 = vpop.permute.xlu0 %1693
          %1697 = vset.pattern.permute.xlu0 0
          %1698 = vperm.xlu0 %1697, %v1668
          %v1699 = vpop.permute.xlu0 %1698
          %1702 = vset.pattern.permute.xlu0 0
          %1703 = vperm.xlu0 %1702, %v1669
          %v1704 = vpop.permute.xlu0 %1703
          %1707 = vset.pattern.permute.xlu0 0
          %1708 = vperm.xlu0 %1707, %v1670
          %v1709 = vpop.permute.xlu0 %1708
          %1712 = vset.pattern.permute.xlu0 0
          %1713 = vperm.xlu0 %1712, %v1671
          %v1714 = vpop.permute.xlu0 %1713
          %1717 = vset.pattern.permute.xlu0 0
          %1718 = vperm.xlu0 %1717, %v1672
          %v1719 = vpop.permute.xlu0 %1718
          %1722 = vset.pattern.permute.xlu0 0
          %1723 = vperm.xlu0 %1722, %v1673
          %v1724 = vpop.permute.xlu0 %1723
          %1727 = vset.pattern.permute.xlu0 0
          %1728 = vperm.xlu0 %1727, %v1674
          %v1729 = vpop.permute.xlu0 %1728
          %1732 = vset.pattern.permute.xlu0 0
          %1733 = vperm.xlu0 %1732, %v1675
          %v1734 = vpop.permute.xlu0 %1733
          %1737 = vset.pattern.permute.xlu0 0
          %1738 = vperm.xlu0 %1737, %v1676
          %v1739 = vpop.permute.xlu0 %1738
          %1742 = vset.pattern.permute.xlu0 0
          %1743 = vperm.xlu0 %1742, %v1677
          %v1744 = vpop.permute.xlu0 %1743
          %1747 = vset.pattern.permute.xlu0 0
          %1748 = vperm.xlu0 %1747, %v1678
          %v1749 = vpop.permute.xlu0 %1748
          %1752 = vset.pattern.permute.xlu0 0
          %1753 = vperm.xlu0 %1752, %v1679
          %v1754 = vpop.permute.xlu0 %1753
          %1757 = vset.pattern.permute.xlu0 0
          %1758 = vperm.xlu0 %1757, %v1680
          %v1759 = vpop.permute.xlu0 %1758
          %v1793 = vunpack.c.l.b16 %v1633
          %v1794 = vunpack.c.h.b16 %v1633
          %v1795 = vunpack.c.l.b16 %v1634
          %v1796 = vunpack.c.h.b16 %v1634
          %v1797 = vunpack.c.l.b16 %v1635
          %v1798 = vunpack.c.h.b16 %v1635
          %v1799 = vunpack.c.l.b16 %v1636
          %v1800 = vunpack.c.h.b16 %v1636
          %v1801 = vunpack.c.l.b16 %v1637
          %v1802 = vunpack.c.h.b16 %v1637
          %v1803 = vunpack.c.l.b16 %v1638
          %v1804 = vunpack.c.h.b16 %v1638
          %v1805 = vunpack.c.l.b16 %v1639
          %v1806 = vunpack.c.h.b16 %v1639
          %v1807 = vunpack.c.l.b16 %v1640
          %v1808 = vunpack.c.h.b16 %v1640
          %v1809 = vunpack.c.l.b16 %v1641
          %v1810 = vunpack.c.h.b16 %v1641
          %v1811 = vunpack.c.l.b16 %v1642
          %v1812 = vunpack.c.h.b16 %v1642
          %v1813 = vunpack.c.l.b16 %v1643
          %v1814 = vunpack.c.h.b16 %v1643
          %v1815 = vunpack.c.l.b16 %v1644
          %v1816 = vunpack.c.h.b16 %v1644
          %v1817 = vunpack.c.l.b16 %v1645
          %v1818 = vunpack.c.h.b16 %v1645
          %v1819 = vunpack.c.l.b16 %v1646
          %v1820 = vunpack.c.h.b16 %v1646
          %v1821 = vunpack.c.l.b16 %v1647
          %v1822 = vunpack.c.h.b16 %v1647
          %v1823 = vunpack.c.l.b16 %v1648
          %v1824 = vunpack.c.h.b16 %v1648
          %v1825 = vunpack.c.l.b16 %v1649
          %v1826 = vunpack.c.h.b16 %v1649
          %v1827 = vunpack.c.l.b16 %v1650
          %v1828 = vunpack.c.h.b16 %v1650
          %v1829 = vunpack.c.l.b16 %v1651
          %v1830 = vunpack.c.h.b16 %v1651
          %v1831 = vunpack.c.l.b16 %v1652
          %v1832 = vunpack.c.h.b16 %v1652
          %v1833 = vunpack.c.l.b16 %v1653
          %v1834 = vunpack.c.h.b16 %v1653
          %v1835 = vunpack.c.l.b16 %v1654
          %v1836 = vunpack.c.h.b16 %v1654
          %v1837 = vunpack.c.l.b16 %v1655
          %v1838 = vunpack.c.h.b16 %v1655
          %v1839 = vunpack.c.l.b16 %v1656
          %v1840 = vunpack.c.h.b16 %v1656
          %v1841 = vunpack.c.l.b16 %v1657
          %v1842 = vunpack.c.h.b16 %v1657
          %v1843 = vunpack.c.l.b16 %v1658
          %v1844 = vunpack.c.h.b16 %v1658
          %v1845 = vunpack.c.l.b16 %v1659
          %v1846 = vunpack.c.h.b16 %v1659
          %v1847 = vunpack.c.l.b16 %v1660
          %v1848 = vunpack.c.h.b16 %v1660
          %v1849 = vunpack.c.l.b16 %v1661
          %v1850 = vunpack.c.h.b16 %v1661
          %v1851 = vunpack.c.l.b16 %v1662
          %v1852 = vunpack.c.h.b16 %v1662
          %v1853 = vunpack.c.l.b16 %v1663
          %v1854 = vunpack.c.h.b16 %v1663
          %v1855 = vunpack.c.l.b16 %v1664
          %v1856 = vunpack.c.h.b16 %v1664
          %v1857 = vpack.c.b16 %v1797, %v1793
          %v1858 = vpack.c.b16 %v1798, %v1794
          %v1859 = vpack.c.b16 %v1799, %v1795
          %v1860 = vpack.c.b16 %v1800, %v1796
          %v1861 = vpack.c.b16 %v1805, %v1801
          %v1862 = vpack.c.b16 %v1806, %v1802
          %v1863 = vpack.c.b16 %v1807, %v1803
          %v1864 = vpack.c.b16 %v1808, %v1804
          %v1865 = vpack.c.b16 %v1813, %v1809
          %v1866 = vpack.c.b16 %v1814, %v1810
          %v1867 = vpack.c.b16 %v1815, %v1811
          %v1868 = vpack.c.b16 %v1816, %v1812
          %v1869 = vpack.c.b16 %v1821, %v1817
          %v1870 = vpack.c.b16 %v1822, %v1818
          %v1871 = vpack.c.b16 %v1823, %v1819
          %v1872 = vpack.c.b16 %v1824, %v1820
          %v1873 = vpack.c.b16 %v1829, %v1825
          %v1874 = vpack.c.b16 %v1830, %v1826
          %v1875 = vpack.c.b16 %v1831, %v1827
          %v1876 = vpack.c.b16 %v1832, %v1828
          %v1877 = vpack.c.b16 %v1837, %v1833
          %v1878 = vpack.c.b16 %v1838, %v1834
          %v1879 = vpack.c.b16 %v1839, %v1835
          %v1880 = vpack.c.b16 %v1840, %v1836
          %v1881 = vpack.c.b16 %v1845, %v1841
          %v1882 = vpack.c.b16 %v1846, %v1842
          %v1883 = vpack.c.b16 %v1847, %v1843
          %v1884 = vpack.c.b16 %v1848, %v1844
          %v1885 = vpack.c.b16 %v1853, %v1849
          %v1886 = vpack.c.b16 %v1854, %v1850
          %v1887 = vpack.c.b16 %v1855, %v1851
          %v1888 = vpack.c.b16 %v1856, %v1852
          %1921 = vmatprep.subr.bf16.mxu0 0
          %1922 = vmatpush1.bf16.msra.mxu0 %v1601
          %1923 = vmatprep.subr.bf16.mxu0 0
          %1924 = vmatpush1.bf16.msra.mxu0 %v1602
          %1925 = vmatprep.subr.bf16.mxu0 0
          %1926 = vmatpush1.bf16.msra.mxu0 %v1603
          %1927 = vmatprep.subr.bf16.mxu0 0
          %1928 = vmatpush1.bf16.msra.mxu0 %v1604
          %1929 = vmatprep.subr.bf16.mxu0 0
          %1930 = vmatpush1.bf16.msra.mxu0 %v1605
          %1931 = vmatprep.subr.bf16.mxu0 0
          %1932 = vmatpush1.bf16.msra.mxu0 %v1606
          %1933 = vmatprep.subr.bf16.mxu0 0
          %1934 = vmatpush1.bf16.msra.mxu0 %v1607
          %1935 = vmatprep.subr.bf16.mxu0 0
          %1936 = vmatpush1.bf16.msra.mxu0 %v1608
          %1937 = vmatprep.subr.bf16.mxu0 0
          %1938 = vmatpush1.bf16.msra.mxu0 %v1609
          %1939 = vmatprep.subr.bf16.mxu0 0
          %1940 = vmatpush1.bf16.msra.mxu0 %v1610
          %1941 = vmatprep.subr.bf16.mxu0 0
          %1942 = vmatpush1.bf16.msra.mxu0 %v1611
          %1943 = vmatprep.subr.bf16.mxu0 0
          %1944 = vmatpush1.bf16.msra.mxu0 %v1612
          %1945 = vmatprep.subr.bf16.mxu0 0
          %1946 = vmatpush1.bf16.msra.mxu0 %v1613
          %1947 = vmatprep.subr.bf16.mxu0 0
          %1948 = vmatpush1.bf16.msra.mxu0 %v1614
          %1949 = vmatprep.subr.bf16.mxu0 0
          %1950 = vmatpush1.bf16.msra.mxu0 %v1615
          %1951 = vmatprep.subr.bf16.mxu0 0
          %1952 = vmatpush1.bf16.msra.mxu0 %v1616
          %1953 = vmatprep.mubr.bf16.mxu0 %v1858
          %1954 = vmatmul.mubr.bf16.gmra.mrb[0].mxu0 %v1857
          %v1955 = vpop.f32.mrb[0].mxu0
          %v1956 = vadd.f32 %v1684, %v1955
          %v1957 = vpop.f32.mrb[0].mxu0
          %v1958 = vpop.f32.mrb[0].mxu0
          %v1959 = vadd.f32 %v1689, %v1958
          %v1960 = vpop.f32.mrb[0].mxu0
          %1961 = vmatprep.mubr.bf16.mxu0 %v1862
          %1962 = vmatmul.mubr.bf16.gmra.mrb[0].mxu0 %v1861
          %v1963 = vpop.f32.mrb[0].mxu0
          %v1964 = vadd.f32 %v1694, %v1963
          %v1965 = vpop.f32.mrb[0].mxu0
          %v1966 = vpop.f32.mrb[0].mxu0
          %v1967 = vadd.f32 %v1699, %v1966
          %v1968 = vpop.f32.mrb[0].mxu0
          %1969 = vmatprep.mubr.bf16.mxu0 %v1866
          %1970 = vmatmul.mubr.bf16.gmra.mrb[0].mxu0 %v1865
          %v1971 = vpop.f32.mrb[0].mxu0
          %v1972 = vadd.f32 %v1704, %v1971
          %v1973 = vpop.f32.mrb[0].mxu0
          %v1974 = vpop.f32.mrb[0].mxu0
          %v1975 = vadd.f32 %v1709, %v1974
          %v1976 = vpop.f32.mrb[0].mxu0
          %1977 = vmatprep.mubr.bf16.mxu0 %v1870
          %1978 = vmatmul.mubr.bf16.gmra.mrb[0].mxu0 %v1869
          %v1979 = vpop.f32.mrb[0].mxu0
          %v1980 = vadd.f32 %v1714, %v1979
          %v1981 = vpop.f32.mrb[0].mxu0
          %v1982 = vpop.f32.mrb[0].mxu0
          %v1983 = vadd.f32 %v1719, %v1982
          %v1984 = vpop.f32.mrb[0].mxu0
          %1985 = vmatprep.mubr.bf16.mxu0 %v1874
          %1986 = vmatmul.mubr.bf16.gmra.mrb[0].mxu0 %v1873
          %v1987 = vpop.f32.mrb[0].mxu0
          %v1988 = vadd.f32 %v1724, %v1987
          %v1989 = vpop.f32.mrb[0].mxu0
          %v1990 = vpop.f32.mrb[0].mxu0
          %v1991 = vadd.f32 %v1729, %v1990
          %v1992 = vpop.f32.mrb[0].mxu0
          %1993 = vmatprep.mubr.bf16.mxu0 %v1878
          %1994 = vmatmul.mubr.bf16.gmra.mrb[0].mxu0 %v1877
          %v1995 = vpop.f32.mrb[0].mxu0
          %v1996 = vadd.f32 %v1734, %v1995
          %v1997 = vpop.f32.mrb[0].mxu0
          %v1998 = vpop.f32.mrb[0].mxu0
          %v1999 = vadd.f32 %v1739, %v1998
          %v2000 = vpop.f32.mrb[0].mxu0
          %2001 = vmatprep.mubr.bf16.mxu0 %v1882
          %2002 = vmatmul.mubr.bf16.gmra.mrb[0].mxu0 %v1881
          %v2003 = vpop.f32.mrb[0].mxu0
          %v2004 = vadd.f32 %v1744, %v2003
          %v2005 = vpop.f32.mrb[0].mxu0
          %v2006 = vpop.f32.mrb[0].mxu0
          %v2007 = vadd.f32 %v1749, %v2006
          %v2008 = vpop.f32.mrb[0].mxu0
          %2009 = vmatprep.mubr.bf16.mxu0 %v1886
          %2010 = vmatmul.mubr.bf16.gmra.mrb[0].mxu0 %v1885
          %v2011 = vpop.f32.mrb[0].mxu0
          %v2012 = vadd.f32 %v1754, %v2011
          %v2013 = vpop.f32.mrb[0].mxu0
          %v2014 = vpop.f32.mrb[0].mxu0
          %v2015 = vadd.f32 %v1759, %v2014
          %v2016 = vpop.f32.mrb[0].mxu0
          %2017 = vdwg.mxu0
          %2018 = vmatprep.subr.bf16.mxu0 0
          %2019 = vmatpush1.bf16.msra.mxu0 %v1617
          %2020 = vmatprep.subr.bf16.mxu0 0
          %2021 = vmatpush1.bf16.msra.mxu0 %v1618
          %2022 = vmatprep.subr.bf16.mxu0 0
          %2023 = vmatpush1.bf16.msra.mxu0 %v1619
          %2024 = vmatprep.subr.bf16.mxu0 0
          %2025 = vmatpush1.bf16.msra.mxu0 %v1620
          %2026 = vmatprep.subr.bf16.mxu0 0
          %2027 = vmatpush1.bf16.msra.mxu0 %v1621
          %2028 = vmatprep.subr.bf16.mxu0 0
          %2029 = vmatpush1.bf16.msra.mxu0 %v1622
          %2030 = vmatprep.subr.bf16.mxu0 0
          %2031 = vmatpush1.bf16.msra.mxu0 %v1623
          %2032 = vmatprep.subr.bf16.mxu0 0
          %2033 = vmatpush1.bf16.msra.mxu0 %v1624
          %2034 = vmatprep.subr.bf16.mxu0 0
          %2035 = vmatpush1.bf16.msra.mxu0 %v1625
          %2036 = vmatprep.subr.bf16.mxu0 0
          %2037 = vmatpush1.bf16.msra.mxu0 %v1626
          %2038 = vmatprep.subr.bf16.mxu0 0
          %2039 = vmatpush1.bf16.msra.mxu0 %v1627
          %2040 = vmatprep.subr.bf16.mxu0 0
          %2041 = vmatpush1.bf16.msra.mxu0 %v1628
          %2042 = vmatprep.subr.bf16.mxu0 0
          %2043 = vmatpush1.bf16.msra.mxu0 %v1629
          %2044 = vmatprep.subr.bf16.mxu0 0
          %2045 = vmatpush1.bf16.msra.mxu0 %v1630
          %2046 = vmatprep.subr.bf16.mxu0 0
          %2047 = vmatpush1.bf16.msra.mxu0 %v1631
          %2048 = vmatprep.subr.bf16.mxu0 0
          %2049 = vmatpush1.bf16.msra.mxu0 %v1632
          %2050 = vmatprep.mubr.bf16.mxu0 %v1860
          %2051 = vmatmul.mubr.bf16.gmra.mrb[0].mxu0 %v1859
          %v2052 = vpop.f32.mrb[0].mxu0
          %v2053 = vadd.f32 %v1956, %v2052
          %v2054 = vpop.f32.mrb[0].mxu0
          %v2055 = vpop.f32.mrb[0].mxu0
          %v2056 = vadd.f32 %v1959, %v2055
          %v2057 = vpop.f32.mrb[0].mxu0
          %2058 = vmatprep.mubr.bf16.mxu0 %v1864
          %2059 = vmatmul.mubr.bf16.gmra.mrb[0].mxu0 %v1863
          %v2060 = vpop.f32.mrb[0].mxu0
          %v2061 = vadd.f32 %v1964, %v2060
          %v2062 = vpop.f32.mrb[0].mxu0
          %v2063 = vpop.f32.mrb[0].mxu0
          %v2064 = vadd.f32 %v1967, %v2063
          %v2065 = vpop.f32.mrb[0].mxu0
          %2066 = vmatprep.mubr.bf16.mxu0 %v1868
          %2067 = vmatmul.mubr.bf16.gmra.mrb[0].mxu0 %v1867
          %v2068 = vpop.f32.mrb[0].mxu0
          %v2069 = vadd.f32 %v1972, %v2068
          %v2070 = vpop.f32.mrb[0].mxu0
          %v2071 = vpop.f32.mrb[0].mxu0
          %v2072 = vadd.f32 %v1975, %v2071
          %v2073 = vpop.f32.mrb[0].mxu0
          %2074 = vmatprep.mubr.bf16.mxu0 %v1872
          %2075 = vmatmul.mubr.bf16.gmra.mrb[0].mxu0 %v1871
          %v2076 = vpop.f32.mrb[0].mxu0
          %v2077 = vadd.f32 %v1980, %v2076
          %v2078 = vpop.f32.mrb[0].mxu0
          %v2079 = vpop.f32.mrb[0].mxu0
          %v2080 = vadd.f32 %v1983, %v2079
          %v2081 = vpop.f32.mrb[0].mxu0
          %2082 = vmatprep.mubr.bf16.mxu0 %v1876
          %2083 = vmatmul.mubr.bf16.gmra.mrb[0].mxu0 %v1875
          %v2084 = vpop.f32.mrb[0].mxu0
          %v2085 = vadd.f32 %v1988, %v2084
          %v2086 = vpop.f32.mrb[0].mxu0
          %v2087 = vpop.f32.mrb[0].mxu0
          %v2088 = vadd.f32 %v1991, %v2087
          %v2089 = vpop.f32.mrb[0].mxu0
          %2090 = vmatprep.mubr.bf16.mxu0 %v1880
          %2091 = vmatmul.mubr.bf16.gmra.mrb[0].mxu0 %v1879
          %v2092 = vpop.f32.mrb[0].mxu0
          %v2093 = vadd.f32 %v1996, %v2092
          %v2094 = vpop.f32.mrb[0].mxu0
          %v2095 = vpop.f32.mrb[0].mxu0
          %v2096 = vadd.f32 %v1999, %v2095
          %v2097 = vpop.f32.mrb[0].mxu0
          %2098 = vmatprep.mubr.bf16.mxu0 %v1884
          %2099 = vmatmul.mubr.bf16.gmra.mrb[0].mxu0 %v1883
          %v2100 = vpop.f32.mrb[0].mxu0
          %v2101 = vadd.f32 %v2004, %v2100
          %v2102 = vpop.f32.mrb[0].mxu0
          %v2103 = vpop.f32.mrb[0].mxu0
          %v2104 = vadd.f32 %v2007, %v2103
          %v2105 = vpop.f32.mrb[0].mxu0
          %2106 = vmatprep.mubr.bf16.mxu0 %v1888
          %2107 = vmatmul.mubr.bf16.gmra.mrb[0].mxu0 %v1887
          %v2108 = vpop.f32.mrb[0].mxu0
          %v2109 = vadd.f32 %v2012, %v2108
          %v2110 = vpop.f32.mrb[0].mxu0
          %v2111 = vpop.f32.mrb[0].mxu0
          %v2112 = vadd.f32 %v2015, %v2111
          %v2113 = vpop.f32.mrb[0].mxu0
          %2114 = vdwg.mxu0
          %v2115 = vld [vmem:[#allocation17] sm:$0xff]
          %v2116 = vld [vmem:[#allocation17 + $0x8] sm:$0xff]
          %v2117 = vld [vmem:[#allocation17 + $0x10] sm:$0xff]
          %v2118 = vld [vmem:[#allocation17 + $0x18] sm:$0xff]
          %v2119 = vld [vmem:[#allocation17 + $0x20] sm:$0xff]
          %v2120 = vld [vmem:[#allocation17 + $0x28] sm:$0xff]
          %v2121 = vld [vmem:[#allocation17 + $0x30] sm:$0xff]
          %v2122 = vld [vmem:[#allocation17 + $0x38] sm:$0xff]
          %v2123 = vld [vmem:[#allocation17 + $0x40] sm:$0xff]
          %v2124 = vld [vmem:[#allocation17 + $0x48] sm:$0xff]
          %v2125 = vld [vmem:[#allocation17 + $0x50] sm:$0xff]
          %v2126 = vld [vmem:[#allocation17 + $0x58] sm:$0xff]
          %v2127 = vld [vmem:[#allocation17 + $0x60] sm:$0xff]
          %v2128 = vld [vmem:[#allocation17 + $0x68] sm:$0xff]
          %v2129 = vld [vmem:[#allocation17 + $0x70] sm:$0xff]
          %v2130 = vld [vmem:[#allocation17 + $0x78] sm:$0xff]
          %v2131 = vand.u32 2147483647, %v2053
          %v2132 = vand.u32 2147483647, %v2056
          %v2133 = vand.u32 2147483647, %v2061
          %v2134 = vand.u32 2147483647, %v2064
          %v2135 = vand.u32 2147483647, %v2069
          %v2136 = vand.u32 2147483647, %v2072
          %v2137 = vand.u32 2147483647, %v2077
          %v2138 = vand.u32 2147483647, %v2080
          %v2139 = vand.u32 2147483647, %v2085
          %v2140 = vand.u32 2147483647, %v2088
          %v2141 = vand.u32 2147483647, %v2093
          %v2142 = vand.u32 2147483647, %v2096
          %v2143 = vand.u32 2147483647, %v2101
          %v2144 = vand.u32 2147483647, %v2104
          %v2145 = vand.u32 2147483647, %v2109
          %v2146 = vand.u32 2147483647, %v2112
          %v2148 = vlaneseq
          %v2149 = vshrl.u32 %v2148, 7
          %v2150 = vsub.s32 0, %v2149
          %v2151 = vrot.slane %v534, %v2150
          %v2153 = vmul.f32 %v2131, %v2151
          %v2154 = vmul.f32 %v2132, %v2151
          %v2155 = vmul.f32 %v2133, %v2151
          %v2156 = vmul.f32 %v2134, %v2151
          %v2157 = vmul.f32 %v2135, %v2151
          %v2158 = vmul.f32 %v2136, %v2151
          %v2159 = vmul.f32 %v2137, %v2151
          %v2160 = vmul.f32 %v2138, %v2151
          %v2161 = vmul.f32 %v2139, %v2151
          %v2162 = vmul.f32 %v2140, %v2151
          %v2163 = vmul.f32 %v2141, %v2151
          %v2164 = vmul.f32 %v2142, %v2151
          %v2165 = vmul.f32 %v2143, %v2151
          %v2166 = vmul.f32 %v2144, %v2151
          %v2167 = vmul.f32 %v2145, %v2151
          %v2168 = vmul.f32 %v2146, %v2151
          %vm2169 = vcmask 64512
          %v2170 = vsel %vm2169, %v2153, 0.0
          %2171 = vadd.xlane.f32.xlu0 %v2170
          %v2172 = vpop.xlane.xlu0 %2171
          %v2173 = vsel %vm2169, %v2154, 0.0
          %2174 = vadd.xlane.f32.xlu0 %v2173
          %v2175 = vpop.xlane.xlu0 %2174
          %v2176 = vsel %vm2169, %v2155, 0.0
          %2177 = vadd.xlane.f32.xlu0 %v2176
          %v2178 = vpop.xlane.xlu0 %2177
          %v2179 = vsel %vm2169, %v2156, 0.0
          %2180 = vadd.xlane.f32.xlu0 %v2179
          %v2181 = vpop.xlane.xlu0 %2180
          %v2182 = vsel %vm2169, %v2157, 0.0
          %2183 = vadd.xlane.f32.xlu0 %v2182
          %v2184 = vpop.xlane.xlu0 %2183
          %v2185 = vsel %vm2169, %v2158, 0.0
          %2186 = vadd.xlane.f32.xlu0 %v2185
          %v2187 = vpop.xlane.xlu0 %2186
          %v2188 = vsel %vm2169, %v2159, 0.0
          %2189 = vadd.xlane.f32.xlu0 %v2188
          %v2190 = vpop.xlane.xlu0 %2189
          %v2191 = vsel %vm2169, %v2160, 0.0
          %2192 = vadd.xlane.f32.xlu0 %v2191
          %v2193 = vpop.xlane.xlu0 %2192
          %v2194 = vsel %vm2169, %v2161, 0.0
          %2195 = vadd.xlane.f32.xlu0 %v2194
          %v2196 = vpop.xlane.xlu0 %2195
          %v2197 = vsel %vm2169, %v2162, 0.0
          %2198 = vadd.xlane.f32.xlu0 %v2197
          %v2199 = vpop.xlane.xlu0 %2198
          %v2200 = vsel %vm2169, %v2163, 0.0
          %2201 = vadd.xlane.f32.xlu0 %v2200
          %v2202 = vpop.xlane.xlu0 %2201
          %v2203 = vsel %vm2169, %v2164, 0.0
          %2204 = vadd.xlane.f32.xlu0 %v2203
          %v2205 = vpop.xlane.xlu0 %2204
          %v2206 = vsel %vm2169, %v2165, 0.0
          %2207 = vadd.xlane.f32.xlu0 %v2206
          %v2208 = vpop.xlane.xlu0 %2207
          %v2209 = vsel %vm2169, %v2166, 0.0
          %2210 = vadd.xlane.f32.xlu0 %v2209
          %v2211 = vpop.xlane.xlu0 %2210
          %v2212 = vsel %vm2169, %v2167, 0.0
          %2213 = vadd.xlane.f32.xlu0 %v2212
          %v2214 = vpop.xlane.xlu0 %2213
          %v2215 = vsel %vm2169, %v2168, 0.0
          %2216 = vadd.xlane.f32.xlu0 %v2215
          %v2217 = vpop.xlane.xlu0 %2216
          %v2218 = vadd.f32 %v2115, %v2172
          %v2219 = vadd.f32 %v2116, %v2175
          %v2220 = vadd.f32 %v2117, %v2178
          %v2221 = vadd.f32 %v2118, %v2181
          %v2222 = vadd.f32 %v2119, %v2184
          %v2223 = vadd.f32 %v2120, %v2187
          %v2224 = vadd.f32 %v2121, %v2190
          %v2225 = vadd.f32 %v2122, %v2193
          %v2226 = vadd.f32 %v2123, %v2196
          %v2227 = vadd.f32 %v2124, %v2199
          %v2228 = vadd.f32 %v2125, %v2202
          %v2229 = vadd.f32 %v2126, %v2205
          %v2230 = vadd.f32 %v2127, %v2208
          %v2231 = vadd.f32 %v2128, %v2211
          %v2232 = vadd.f32 %v2129, %v2214
          %v2233 = vadd.f32 %v2130, %v2217
          %vm2234 = vcmask 7168
          %2235 = vst.msk [vmem:[#allocation17] sm:$0xff] %vm2234, %v2218
          %2236 = vst.msk [vmem:[#allocation17 + $0x8] sm:$0xff] %vm2234, %v2219
          %2237 = vst.msk [vmem:[#allocation17 + $0x10] sm:$0xff] %vm2234, %v2220
          %2238 = vst.msk [vmem:[#allocation17 + $0x18] sm:$0xff] %vm2234, %v2221
          %2239 = vst.msk [vmem:[#allocation17 + $0x20] sm:$0xff] %vm2234, %v2222
          %2240 = vst.msk [vmem:[#allocation17 + $0x28] sm:$0xff] %vm2234, %v2223
          %2241 = vst.msk [vmem:[#allocation17 + $0x30] sm:$0xff] %vm2234, %v2224
          %2242 = vst.msk [vmem:[#allocation17 + $0x38] sm:$0xff] %vm2234, %v2225
          %2243 = vst.msk [vmem:[#allocation17 + $0x40] sm:$0xff] %vm2234, %v2226
          %2244 = vst.msk [vmem:[#allocation17 + $0x48] sm:$0xff] %vm2234, %v2227
          %2245 = vst.msk [vmem:[#allocation17 + $0x50] sm:$0xff] %vm2234, %v2228
          %2246 = vst.msk [vmem:[#allocation17 + $0x58] sm:$0xff] %vm2234, %v2229
          %2247 = vst.msk [vmem:[#allocation17 + $0x60] sm:$0xff] %vm2234, %v2230
          %2248 = vst.msk [vmem:[#allocation17 + $0x68] sm:$0xff] %vm2234, %v2231
          %2249 = vst.msk [vmem:[#allocation17 + $0x70] sm:$0xff] %vm2234, %v2232
          %2250 = vst.msk [vmem:[#allocation17 + $0x78] sm:$0xff] %vm2234, %v2233
          // Predicated region
          $region97: #{tpu_custom_call.1} parent=91 // pred_check
            %p2251 = pneg %p539
          $region98: #{tpu_custom_call.1} parent=91 // pred_check_branch
            %2253 = sbr.rel (%p2251) target = $region100
          $region99: #{tpu_custom_call.1} parent=91 // pred_region
            %v2254 = vld [vmem:[#allocation17] sm:$0xff]
            %v2255 = vld [vmem:[#allocation17 + $0x8] sm:$0xff]
            %v2256 = vld [vmem:[#allocation17 + $0x10] sm:$0xff]
            %v2257 = vld [vmem:[#allocation17 + $0x18] sm:$0xff]
            %v2258 = vld [vmem:[#allocation17 + $0x20] sm:$0xff]
            %v2259 = vld [vmem:[#allocation17 + $0x28] sm:$0xff]
            %v2260 = vld [vmem:[#allocation17 + $0x30] sm:$0xff]
            %v2261 = vld [vmem:[#allocation17 + $0x38] sm:$0xff]
            %v2262 = vld [vmem:[#allocation17 + $0x40] sm:$0xff]
            %v2263 = vld [vmem:[#allocation17 + $0x48] sm:$0xff]
            %v2264 = vld [vmem:[#allocation17 + $0x50] sm:$0xff]
            %v2265 = vld [vmem:[#allocation17 + $0x58] sm:$0xff]
            %v2266 = vld [vmem:[#allocation17 + $0x60] sm:$0xff]
            %v2267 = vld [vmem:[#allocation17 + $0x68] sm:$0xff]
            %v2268 = vld [vmem:[#allocation17 + $0x70] sm:$0xff]
            %v2269 = vld [vmem:[#allocation17 + $0x78] sm:$0xff]
            %v2270 = vld [vmem:[#allocation2] sm:$0x1]
            %v2272 = vlaneseq
            %v2273 = vshrl.u32 %v2272, 7
            %v2274 = vsub.s32 0, %v2273
            %v2275 = vrot.slane %v2270, %v2274
            %vm2277 = vcmp.lt.f32.partialorder %v2254, %v2275
            %vm2278 = vcmp.lt.f32.partialorder %v2255, %v2275
            %vm2279 = vcmp.lt.f32.partialorder %v2256, %v2275
            %vm2280 = vcmp.lt.f32.partialorder %v2257, %v2275
            %vm2281 = vcmp.lt.f32.partialorder %v2258, %v2275
            %vm2282 = vcmp.lt.f32.partialorder %v2259, %v2275
            %vm2283 = vcmp.lt.f32.partialorder %v2260, %v2275
            %vm2284 = vcmp.lt.f32.partialorder %v2261, %v2275
            %vm2285 = vcmp.lt.f32.partialorder %v2262, %v2275
            %vm2286 = vcmp.lt.f32.partialorder %v2263, %v2275
            %vm2287 = vcmp.lt.f32.partialorder %v2264, %v2275
            %vm2288 = vcmp.lt.f32.partialorder %v2265, %v2275
            %vm2289 = vcmp.lt.f32.partialorder %v2266, %v2275
            %vm2290 = vcmp.lt.f32.partialorder %v2267, %v2275
            %vm2291 = vcmp.lt.f32.partialorder %v2268, %v2275
            %vm2292 = vcmp.lt.f32.partialorder %v2269, %v2275
            %v2293 = vsel %vm2277, 0.0, %v2254
            %v2294 = vsel %vm2278, 0.0, %v2255
            %v2295 = vsel %vm2279, 0.0, %v2256
            %v2296 = vsel %vm2280, 0.0, %v2257
            %v2297 = vsel %vm2281, 0.0, %v2258
            %v2298 = vsel %vm2282, 0.0, %v2259
            %v2299 = vsel %vm2283, 0.0, %v2260
            %v2300 = vsel %vm2284, 0.0, %v2261
            %v2301 = vsel %vm2285, 0.0, %v2262
            %v2302 = vsel %vm2286, 0.0, %v2263
            %v2303 = vsel %vm2287, 0.0, %v2264
            %v2304 = vsel %vm2288, 0.0, %v2265
            %v2305 = vsel %vm2289, 0.0, %v2266
            %v2306 = vsel %vm2290, 0.0, %v2267
            %v2307 = vsel %vm2291, 0.0, %v2268
            %v2308 = vsel %vm2292, 0.0, %v2269
            %2309 = vst.msk [vmem:[#allocation18] sm:$0xff] %vm2234, %v2293
            %2310 = vst.msk [vmem:[#allocation18 + $0x8] sm:$0xff] %vm2234, %v2294
            %2311 = vst.msk [vmem:[#allocation18 + $0x10] sm:$0xff] %vm2234, %v2295
            %2312 = vst.msk [vmem:[#allocation18 + $0x18] sm:$0xff] %vm2234, %v2296
            %2313 = vst.msk [vmem:[#allocation18 + $0x20] sm:$0xff] %vm2234, %v2297
            %2314 = vst.msk [vmem:[#allocation18 + $0x28] sm:$0xff] %vm2234, %v2298
            %2315 = vst.msk [vmem:[#allocation18 + $0x30] sm:$0xff] %vm2234, %v2299
            %2316 = vst.msk [vmem:[#allocation18 + $0x38] sm:$0xff] %vm2234, %v2300
            %2317 = vst.msk [vmem:[#allocation18 + $0x40] sm:$0xff] %vm2234, %v2301
            %2318 = vst.msk [vmem:[#allocation18 + $0x48] sm:$0xff] %vm2234, %v2302
            %2319 = vst.msk [vmem:[#allocation18 + $0x50] sm:$0xff] %vm2234, %v2303
            %2320 = vst.msk [vmem:[#allocation18 + $0x58] sm:$0xff] %vm2234, %v2304
            %2321 = vst.msk [vmem:[#allocation18 + $0x60] sm:$0xff] %vm2234, %v2305
            %2322 = vst.msk [vmem:[#allocation18 + $0x68] sm:$0xff] %vm2234, %v2306
            %2323 = vst.msk [vmem:[#allocation18 + $0x70] sm:$0xff] %vm2234, %v2307
            %2324 = vst.msk [vmem:[#allocation18 + $0x78] sm:$0xff] %vm2234, %v2308
          $region100: #{tpu_custom_call.1} parent=91 // pred_fallthru
            _
        $region92: #{tpu_custom_call.1} parent=55 // pred_fallthru
          _
        %p2325 = scmp.eq.s32.totalorder %s38, 1
        // Predicated region
        $region101: #{tpu_custom_call.1} parent=55 // pred_check
          %p2326 = pneg %p2325
        $region102: #{tpu_custom_call.1} parent=55 // pred_check_branch
          %2328 = sbr.rel (%p2326) target = $region104
        $region103: #{tpu_custom_call.1} parent=55 // pred_region
          %p2329 = scmp.eq.s32.totalorder %s39, 0
          // Predicated region
          $region105: #{tpu_custom_call.1} parent=103 // pred_check
            %p2330 = pneg %p2329
          $region106: #{tpu_custom_call.1} parent=103 // pred_check_branch
            %2332 = sbr.rel (%p2330) target = $region108
          $region107: #{tpu_custom_call.1} parent=103 // pred_region
            %vm2333 = vcmask 7168
            %2334 = vst.msk [vmem:[#allocation20] sm:$0xff] %vm2333, 0.0
            %2335 = vst.msk [vmem:[#allocation20 + $0x8] sm:$0xff] %vm2333, 0.0
            %2336 = vst.msk [vmem:[#allocation20 + $0x10] sm:$0xff] %vm2333, 0.0
            %2337 = vst.msk [vmem:[#allocation20 + $0x18] sm:$0xff] %vm2333, 0.0
            %2338 = vst.msk [vmem:[#allocation21] sm:$0xff] %vm2333, 0.0
            %2339 = vst.msk [vmem:[#allocation21 + $0x8] sm:$0xff] %vm2333, 0.0
            %2340 = vst.msk [vmem:[#allocation21 + $0x10] sm:$0xff] %vm2333, 0.0
            %2341 = vst.msk [vmem:[#allocation21 + $0x18] sm:$0xff] %vm2333, 0.0
          $region108: #{tpu_custom_call.1} parent=103 // pred_fallthru
            _
          %v2342 = vunpack.c.l.bf16 %v518
          %v2343 = vunpack.c.l.bf16 %v519
          %v2344 = vunpack.c.l.bf16 %v520
          %v2345 = vunpack.c.l.bf16 %v521
          %v2346 = vunpack.c.l.bf16 %v522
          %v2347 = vunpack.c.l.bf16 %v523
          %v2348 = vunpack.c.l.bf16 %v524
          %v2349 = vunpack.c.l.bf16 %v525
          %v2350 = vunpack.c.l.bf16 %v526
          %v2351 = vunpack.c.l.bf16 %v527
          %v2352 = vunpack.c.l.bf16 %v528
          %v2353 = vunpack.c.l.bf16 %v529
          %v2354 = vunpack.c.l.bf16 %v530
          %v2355 = vunpack.c.l.bf16 %v531
          %v2356 = vunpack.c.l.bf16 %v532
          %v2357 = vunpack.c.l.bf16 %v533
          %v2358 = vld [vmem:[#allocation18] sm:$0xff]
          %v2359 = vld [vmem:[#allocation18 + $0x8] sm:$0xff]
          %v2360 = vld [vmem:[#allocation18 + $0x10] sm:$0xff]
          %v2361 = vld [vmem:[#allocation18 + $0x18] sm:$0xff]
          %v2362 = vld [vmem:[#allocation18 + $0x20] sm:$0xff]
          %v2363 = vld [vmem:[#allocation18 + $0x28] sm:$0xff]
          %v2364 = vld [vmem:[#allocation18 + $0x30] sm:$0xff]
          %v2365 = vld [vmem:[#allocation18 + $0x38] sm:$0xff]
          %v2366 = vld [vmem:[#allocation18 + $0x40] sm:$0xff]
          %v2367 = vld [vmem:[#allocation18 + $0x48] sm:$0xff]
          %v2368 = vld [vmem:[#allocation18 + $0x50] sm:$0xff]
          %v2369 = vld [vmem:[#allocation18 + $0x58] sm:$0xff]
          %v2370 = vld [vmem:[#allocation18 + $0x60] sm:$0xff]
          %v2371 = vld [vmem:[#allocation18 + $0x68] sm:$0xff]
          %v2372 = vld [vmem:[#allocation18 + $0x70] sm:$0xff]
          %v2373 = vld [vmem:[#allocation18 + $0x78] sm:$0xff]
          %2375 = vset.pattern.permute.xlu0 0
          %2376 = vperm.xlu0 %2375, %v2358
          %v2377 = vpop.permute.xlu0 %2376
          %2380 = vset.pattern.permute.xlu0 0
          %2381 = vperm.xlu0 %2380, %v2359
          %v2382 = vpop.permute.xlu0 %2381
          %2385 = vset.pattern.permute.xlu0 0
          %2386 = vperm.xlu0 %2385, %v2360
          %v2387 = vpop.permute.xlu0 %2386
          %2390 = vset.pattern.permute.xlu0 0
          %2391 = vperm.xlu0 %2390, %v2361
          %v2392 = vpop.permute.xlu0 %2391
          %2395 = vset.pattern.permute.xlu0 0
          %2396 = vperm.xlu0 %2395, %v2362
          %v2397 = vpop.permute.xlu0 %2396
          %2400 = vset.pattern.permute.xlu0 0
          %2401 = vperm.xlu0 %2400, %v2363
          %v2402 = vpop.permute.xlu0 %2401
          %2405 = vset.pattern.permute.xlu0 0
          %2406 = vperm.xlu0 %2405, %v2364
          %v2407 = vpop.permute.xlu0 %2406
          %2410 = vset.pattern.permute.xlu0 0
          %2411 = vperm.xlu0 %2410, %v2365
          %v2412 = vpop.permute.xlu0 %2411
          %2415 = vset.pattern.permute.xlu0 0
          %2416 = vperm.xlu0 %2415, %v2366
          %v2417 = vpop.permute.xlu0 %2416
          %2420 = vset.pattern.permute.xlu0 0
          %2421 = vperm.xlu0 %2420, %v2367
          %v2422 = vpop.permute.xlu0 %2421
          %2425 = vset.pattern.permute.xlu0 0
          %2426 = vperm.xlu0 %2425, %v2368
          %v2427 = vpop.permute.xlu0 %2426
          %2430 = vset.pattern.permute.xlu0 0
          %2431 = vperm.xlu0 %2430, %v2369
          %v2432 = vpop.permute.xlu0 %2431
          %2435 = vset.pattern.permute.xlu0 0
          %2436 = vperm.xlu0 %2435, %v2370
          %v2437 = vpop.permute.xlu0 %2436
          %2440 = vset.pattern.permute.xlu0 0
          %2441 = vperm.xlu0 %2440, %v2371
          %v2442 = vpop.permute.xlu0 %2441
          %2445 = vset.pattern.permute.xlu0 0
          %2446 = vperm.xlu0 %2445, %v2372
          %v2447 = vpop.permute.xlu0 %2446
          %2450 = vset.pattern.permute.xlu0 0
          %2451 = vperm.xlu0 %2450, %v2373
          %v2452 = vpop.permute.xlu0 %2451
          %v2454 = vmul.f32 %v2342, %v2377
          %v2455 = vmul.f32 %v2343, %v2382
          %v2456 = vmul.f32 %v2344, %v2387
          %v2457 = vmul.f32 %v2345, %v2392
          %v2458 = vmul.f32 %v2346, %v2397
          %v2459 = vmul.f32 %v2347, %v2402
          %v2460 = vmul.f32 %v2348, %v2407
          %v2461 = vmul.f32 %v2349, %v2412
          %v2462 = vmul.f32 %v2350, %v2417
          %v2463 = vmul.f32 %v2351, %v2422
          %v2464 = vmul.f32 %v2352, %v2427
          %v2465 = vmul.f32 %v2353, %v2432
          %v2466 = vmul.f32 %v2354, %v2437
          %v2467 = vmul.f32 %v2355, %v2442
          %v2468 = vmul.f32 %v2356, %v2447
          %v2469 = vmul.f32 %v2357, %v2452
          %v2470 = vpack.c.bf16 %v2455, %v2454
          %v2471 = vpack.c.bf16 %v2457, %v2456
          %v2472 = vpack.c.bf16 %v2459, %v2458
          %v2473 = vpack.c.bf16 %v2461, %v2460
          %v2474 = vpack.c.bf16 %v2463, %v2462
          %v2475 = vpack.c.bf16 %v2465, %v2464
          %v2476 = vpack.c.bf16 %v2467, %v2466
          %v2477 = vpack.c.bf16 %v2469, %v2468
          %v2478 = vld [vmem:[#allocation14] sm:$0xf]
          %v2479 = vld [vmem:[#allocation14 + $0x4] sm:$0xf]
          %v2480 = vld [vmem:[#allocation14 + $0x8] sm:$0xf]
          %v2481 = vld [vmem:[#allocation14 + $0xc] sm:$0xf]
          %v2482 = vld [vmem:[#allocation15] sm:$0xff]
          %v2483 = vld [vmem:[#allocation15 + $0x8] sm:$0xff]
          %v2484 = vld [vmem:[#allocation15 + $0x10] sm:$0xff]
          %v2485 = vld [vmem:[#allocation15 + $0x18] sm:$0xff]
          %2487 = vset.pattern.permute.xlu0 0
          %2488 = vperm.xlu0 %2487, %v2482
          %v2489 = vpop.permute.xlu0 %2488
          %2492 = vset.pattern.permute.xlu0 0
          %2493 = vperm.xlu0 %2492, %v2483
          %v2494 = vpop.permute.xlu0 %2493
          %2497 = vset.pattern.permute.xlu0 0
          %2498 = vperm.xlu0 %2497, %v2484
          %v2499 = vpop.permute.xlu0 %2498
          %2502 = vset.pattern.permute.xlu0 0
          %2503 = vperm.xlu0 %2502, %v2485
          %v2504 = vpop.permute.xlu0 %2503
          %v2510 = vunpack.c.l.b16 %v2478
          %v2511 = vunpack.c.l.b16 %v2479
          %v2512 = vunpack.c.l.b16 %v2480
          %v2513 = vunpack.c.l.b16 %v2481
          %v2514 = vpack.c.b16 %v2511, %v2510
          %v2515 = vpack.c.b16 %v2513, %v2512
          %2518 = vmatprep.subr.bf16.mxu0 0
          %2519 = vmatpush1.bf16.msra.mxu0 %v2470
          %2520 = vmatprep.subr.bf16.mxu0 0
          %2521 = vmatpush1.bf16.msra.mxu0 %v2471
          %2522 = vmatprep.subr.bf16.mxu0 0
          %2523 = vmatpush1.bf16.msra.mxu0 %v2472
          %2524 = vmatprep.subr.bf16.mxu0 0
          %2525 = vmatpush1.bf16.msra.mxu0 %v2473
          %2526 = vmatprep.subr.bf16.mxu0 0
          %2527 = vmatpush1.bf16.msra.mxu0 %v2474
          %2528 = vmatprep.subr.bf16.mxu0 0
          %2529 = vmatpush1.bf16.msra.mxu0 %v2475
          %2530 = vmatprep.subr.bf16.mxu0 0
          %2531 = vmatpush1.bf16.msra.mxu0 %v2476
          %2532 = vmatprep.subr.bf16.mxu0 0
          %2533 = vmatpush1.bf16.msra.mxu0 %v2477
          %2534 = vmatprep.subr.bf16.mxu0 0
          %2535 = vmatpush1.bf16.msra.mxu0 0
          %2536 = vmatprep.subr.bf16.mxu0 0
          %2537 = vmatpush1.bf16.msra.mxu0 0
          %2538 = vmatprep.subr.bf16.mxu0 0
          %2539 = vmatpush1.bf16.msra.mxu0 0
          %2540 = vmatprep.subr.bf16.mxu0 0
          %2541 = vmatpush1.bf16.msra.mxu0 0
          %2542 = vmatprep.subr.bf16.mxu0 0
          %2543 = vmatpush1.bf16.msra.mxu0 0
          %2544 = vmatprep.subr.bf16.mxu0 0
          %2545 = vmatpush1.bf16.msra.mxu0 0
          %2546 = vmatprep.subr.bf16.mxu0 0
          %2547 = vmatpush1.bf16.msra.mxu0 0
          %2548 = vmatprep.subr.bf16.mxu0 0
          %2549 = vmatpush1.bf16.msra.mxu0 0
          %2550 = vmatprep.mubr.bf16.mxu0 0
          %2551 = vmatmul.mubr.bf16.gmra.mrb[0].mxu0 %v2514
          %v2552 = vpop.f32.mrb[0].mxu0
          %v2553 = vadd.f32 %v2489, %v2552
          %v2554 = vpop.f32.mrb[0].mxu0
          %v2555 = vpop.f32.mrb[0].mxu0
          %v2556 = vadd.f32 %v2494, %v2555
          %v2557 = vpop.f32.mrb[0].mxu0
          %2558 = vmatprep.mubr.bf16.mxu0 0
          %2559 = vmatmul.mubr.bf16.gmra.mrb[0].mxu0 %v2515
          %v2560 = vpop.f32.mrb[0].mxu0
          %v2561 = vadd.f32 %v2499, %v2560
          %v2562 = vpop.f32.mrb[0].mxu0
          %v2563 = vpop.f32.mrb[0].mxu0
          %v2564 = vadd.f32 %v2504, %v2563
          %v2565 = vpop.f32.mrb[0].mxu0
          %2566 = vdwg.mxu0
          %v2567 = vmax.f32 %v2553, 0.0
          %v2568 = vmax.f32 %v2556, 0.0
          %v2569 = vmax.f32 %v2561, 0.0
          %v2570 = vmax.f32 %v2564, 0.0
          %v2572 = vlaneseq
          %v2573 = vshrl.u32 %v2572, 7
          %v2574 = vsub.s32 0, %v2573
          %v2575 = vrot.slane %v534, %v2574
          %v2577 = vmul.f32 %v2567, %v2575
          %v2578 = vmul.f32 %v2568, %v2575
          %v2579 = vmul.f32 %v2569, %v2575
          %v2580 = vmul.f32 %v2570, %v2575
          %v2581 = vld [vmem:[#allocation20] sm:$0xff]
          %v2582 = vld [vmem:[#allocation20 + $0x8] sm:$0xff]
          %v2583 = vld [vmem:[#allocation20 + $0x10] sm:$0xff]
          %v2584 = vld [vmem:[#allocation20 + $0x18] sm:$0xff]
          %vm2585 = vcmask 64512
          %v2586 = vsel %vm2585, %v2577, 0.0
          %2587 = vadd.xlane.f32.xlu0 %v2586
          %v2588 = vpop.xlane.xlu0 %2587
          %v2589 = vsel %vm2585, %v2578, 0.0
          %2590 = vadd.xlane.f32.xlu0 %v2589
          %v2591 = vpop.xlane.xlu0 %2590
          %v2592 = vsel %vm2585, %v2579, 0.0
          %2593 = vadd.xlane.f32.xlu0 %v2592
          %v2594 = vpop.xlane.xlu0 %2593
          %v2595 = vsel %vm2585, %v2580, 0.0
          %2596 = vadd.xlane.f32.xlu0 %v2595
          %v2597 = vpop.xlane.xlu0 %2596
          %v2598 = vadd.f32 %v2581, %v2588
          %v2599 = vadd.f32 %v2582, %v2591
          %v2600 = vadd.f32 %v2583, %v2594
          %v2601 = vadd.f32 %v2584, %v2597
          %vm2602 = vcmask 7168
          %2603 = vst.msk [vmem:[#allocation20] sm:$0xff] %vm2602, %v2598
          %2604 = vst.msk [vmem:[#allocation20 + $0x8] sm:$0xff] %vm2602, %v2599
          %2605 = vst.msk [vmem:[#allocation20 + $0x10] sm:$0xff] %vm2602, %v2600
          %2606 = vst.msk [vmem:[#allocation20 + $0x18] sm:$0xff] %vm2602, %v2601
          %v2607 = vld [vmem:[#allocation21] sm:$0xff]
          %v2608 = vld [vmem:[#allocation21 + $0x8] sm:$0xff]
          %v2609 = vld [vmem:[#allocation21 + $0x10] sm:$0xff]
          %v2610 = vld [vmem:[#allocation21 + $0x18] sm:$0xff]
          %v2611 = vmul.f32 %v2577, %v2567
          %v2612 = vmul.f32 %v2578, %v2568
          %v2613 = vmul.f32 %v2579, %v2569
          %v2614 = vmul.f32 %v2580, %v2570
          %v2615 = vsel %vm2585, %v2611, 0.0
          %2616 = vadd.xlane.f32.xlu0 %v2615
          %v2617 = vpop.xlane.xlu0 %2616
          %v2618 = vsel %vm2585, %v2612, 0.0
          %2619 = vadd.xlane.f32.xlu0 %v2618
          %v2620 = vpop.xlane.xlu0 %2619
          %v2621 = vsel %vm2585, %v2613, 0.0
          %2622 = vadd.xlane.f32.xlu0 %v2621
          %v2623 = vpop.xlane.xlu0 %2622
          %v2624 = vsel %vm2585, %v2614, 0.0
          %2625 = vadd.xlane.f32.xlu0 %v2624
          %v2626 = vpop.xlane.xlu0 %2625
          %v2627 = vadd.f32 %v2607, %v2617
          %v2628 = vadd.f32 %v2608, %v2620
          %v2629 = vadd.f32 %v2609, %v2623
          %v2630 = vadd.f32 %v2610, %v2626
          %2631 = vst.msk [vmem:[#allocation21] sm:$0xff] %vm2602, %v2627
          %2632 = vst.msk [vmem:[#allocation21 + $0x8] sm:$0xff] %vm2602, %v2628
          %2633 = vst.msk [vmem:[#allocation21 + $0x10] sm:$0xff] %vm2602, %v2629
          %2634 = vst.msk [vmem:[#allocation21 + $0x18] sm:$0xff] %vm2602, %v2630
          // Predicated region
          $region109: #{tpu_custom_call.1} parent=103 // pred_check
            %p2635 = pneg %p2329
          $region110: #{tpu_custom_call.1} parent=103 // pred_check_branch
            %2637 = sbr.rel (%p2635) target = $region112
          $region111: #{tpu_custom_call.1} parent=103 // pred_region
            %v2638 = vld [vmem:[#allocation20] sm:$0xff]
            %v2639 = vld [vmem:[#allocation20 + $0x8] sm:$0xff]
            %v2640 = vld [vmem:[#allocation20 + $0x10] sm:$0xff]
            %v2641 = vld [vmem:[#allocation20 + $0x18] sm:$0xff]
            %v2642 = vld [vmem:[#allocation21] sm:$0xff]
            %v2643 = vld [vmem:[#allocation21 + $0x8] sm:$0xff]
            %v2644 = vld [vmem:[#allocation21 + $0x10] sm:$0xff]
            %v2645 = vld [vmem:[#allocation21 + $0x18] sm:$0xff]
            %v2646 = vmul.f32 %v2638, %v2638
            %v2647 = vmul.f32 %v2639, %v2639
            %v2648 = vmul.f32 %v2640, %v2640
            %v2649 = vmul.f32 %v2641, %v2641
            %v2650 = vsub.f32 %v2642, %v2646
            %v2651 = vsub.f32 %v2643, %v2647
            %v2652 = vsub.f32 %v2644, %v2648
            %v2653 = vsub.f32 %v2645, %v2649
            %v2654 = vmax.f32 %v2650, 0.0
            %v2655 = vmax.f32 %v2651, 0.0
            %v2656 = vmax.f32 %v2652, 0.0
            %v2657 = vmax.f32 %v2653, 0.0
            %v2658 = vadd.f32 %v2654, 1e-05
            %v2659 = vadd.f32 %v2655, 1e-05
            %v2660 = vadd.f32 %v2656, 1e-05
            %v2661 = vadd.f32 %v2657, 1e-05
            %v2662 = vrsqrt.pop %v2658
            %v2663 = vrsqrt.pop %v2659
            %v2664 = vrsqrt.pop %v2660
            %v2665 = vrsqrt.pop %v2661
            %2666 = vst.msk [vmem:[#allocation21] sm:$0xff] %vm2602, %v2662
            %2667 = vst.msk [vmem:[#allocation21 + $0x8] sm:$0xff] %vm2602, %v2663
            %2668 = vst.msk [vmem:[#allocation21 + $0x10] sm:$0xff] %vm2602, %v2664
            %2669 = vst.msk [vmem:[#allocation21 + $0x18] sm:$0xff] %vm2602, %v2665
          $region112: #{tpu_custom_call.1} parent=103 // pred_fallthru
            _
        $region104: #{tpu_custom_call.1} parent=55 // pred_fallthru
          _
        // Predicated region
        $region113: #{tpu_custom_call.1} parent=55 // pred_check
          %p2670 = pneg %p258
        $region114: #{tpu_custom_call.1} parent=55 // pred_check_branch
          %2672 = sbr.rel (%p2670) target = $region116
        $region115: #{tpu_custom_call.1} parent=55 // pred_region
          %s2674 = ssub.s32 2048, 2048
          %2675 = vsyncadd [#allocation5], %s2674
          %s2676 = sshll.u32 [#allocation17], 4
          %s2677 = int_to_ptr.vmem [resolvable:$true] %s2676
          %2682 = dma.vmem_to_hbm [thread:$0]  %s2677, 2048, %s9, [#allocation5], 128, 128, 8
        $region116: #{tpu_custom_call.1} parent=55 // pred_fallthru
          _
        // Predicated region
        $region117: #{tpu_custom_call.1} parent=55 // pred_check
          %p2683 = pneg %p279
        $region118: #{tpu_custom_call.1} parent=55 // pred_check_branch
          %2685 = sbr.rel (%p2683) target = $region120
        $region119: #{tpu_custom_call.1} parent=55 // pred_region
          %s2687 = ssub.s32 2048, 2048
          %2688 = vsyncadd [#allocation19], %s2687
          %s2689 = sshll.u32 [#allocation18], 4
          %s2690 = int_to_ptr.vmem [resolvable:$true] %s2689
          %2695 = dma.vmem_to_hbm [thread:$0]  %s2690, 2048, %s10, [#allocation19], 128, 128, 8
        $region120: #{tpu_custom_call.1} parent=55 // pred_fallthru
          _
        // Predicated region
        $region121: #{tpu_custom_call.1} parent=55 // pred_check
          %p2696 = pneg %p300
        $region122: #{tpu_custom_call.1} parent=55 // pred_check_branch
          %2698 = sbr.rel (%p2696) target = $region124
        $region123: #{tpu_custom_call.1} parent=55 // pred_region
          %s2700 = ssub.s32 512, 512
          %2701 = vsyncadd [#allocation19], %s2700
          %s2702 = sshll.u32 [#allocation20], 4
          %s2703 = int_to_ptr.vmem [resolvable:$true] %s2702
          %2708 = dma.vmem_to_hbm [thread:$0]  %s2703, 512, %s11, [#allocation19], 128, 128, 8
        $region124: #{tpu_custom_call.1} parent=55 // pred_fallthru
          _
        // Predicated region
        $region125: #{tpu_custom_call.1} parent=55 // pred_check
          %p2709 = pneg %p321
        $region126: #{tpu_custom_call.1} parent=55 // pred_check_branch
          %2711 = sbr.rel (%p2709) target = $region128
        $region127: #{tpu_custom_call.1} parent=55 // pred_region
          %s2713 = ssub.s32 512, 512
          %2714 = vsyncadd [#allocation22], %s2713
          %s2715 = sshll.u32 [#allocation21], 4
          %s2716 = int_to_ptr.vmem [resolvable:$true] %s2715
          %2721 = dma.vmem_to_hbm [thread:$0]  %s2716, 512, %s12, [#allocation22], 128, 128, 8
        $region128: #{tpu_custom_call.1} parent=55 // pred_fallthru
          _
        // Predicated region
        $region129: #{tpu_custom_call.1} parent=55 // pred_check
          %p2722 = pneg %p258
        $region130: #{tpu_custom_call.1} parent=55 // pred_check_branch
          %2724 = sbr.rel (%p2722) target = $region132
        $region131: #{tpu_custom_call.1} parent=55 // pred_region
          %2725 = dma.done [#allocation5], 2048
        $region132: #{tpu_custom_call.1} parent=55 // pred_fallthru
          _
        // Predicated region
        $region133: #{tpu_custom_call.1} parent=55 // pred_check
          %p2726 = pneg %p279
        $region134: #{tpu_custom_call.1} parent=55 // pred_check_branch
          %2728 = sbr.rel (%p2726) target = $region136
        $region135: #{tpu_custom_call.1} parent=55 // pred_region
          %2729 = dma.done [#allocation19], 2048
        $region136: #{tpu_custom_call.1} parent=55 // pred_fallthru
          _
        // Predicated region
        $region137: #{tpu_custom_call.1} parent=55 // pred_check
          %p2730 = pneg %p300
        $region138: #{tpu_custom_call.1} parent=55 // pred_check_branch
          %2732 = sbr.rel (%p2730) target = $region140
        $region139: #{tpu_custom_call.1} parent=55 // pred_region
          %2733 = dma.done [#allocation19], 512
        $region140: #{tpu_custom_call.1} parent=55 // pred_fallthru
          _
        // Predicated region
        $region141: #{tpu_custom_call.1} parent=55 // pred_check
          %p2734 = pneg %p321
        $region142: #{tpu_custom_call.1} parent=55 // pred_check_branch
          %2736 = sbr.rel (%p2734) target = $region144
        $region143: #{tpu_custom_call.1} parent=55 // pred_region
          %2737 = dma.done [#allocation22], 512
        $region144: #{tpu_custom_call.1} parent=55 // pred_fallthru
          _
      $region56: #{tpu_custom_call.1} parent=5 // pred_fallthru
        _
      %p2738 = scmp.le.s32.totalorder 2, %s29
      // Predicated region
      $region145: #{tpu_custom_call.1} parent=5 // pred_check
        %p2739 = pneg %p2738
      $region146: #{tpu_custom_call.1} parent=5 // pred_check_branch
        %2741 = sbr.rel (%p2739) target = $region148
      $region147: #{tpu_custom_call.1} parent=5 // pred_region
        %s2742 = ssub.s32 %s29, 2
      $region148: #{tpu_custom_call.1} parent=5 // pred_fallthru
        _
    $region6: #{tpu_custom_call.1} parent=1 // loop_footer
      %s33 = sadd.s32 1, %s29
    $region7: #{tpu_custom_call.1} parent=1 // loop_footer_branch
      %28 = sbr.rel target = $region3
    $region8: #{tpu_custom_call.1} parent=1 // loop_exit
      _
    %2743 = vsyncpa [#allocation4], 1
    %s2744 = scalar_lea.sflag [#allocation4], 1
    %2745 = vsyncpa %s2744, 1
    %2746 = vsyncpa [#allocation7], 1
    %2747 = vsyncpa [#allocation10], 1
    %2748 = vsyncpa [#allocation13], 1
    %2749 = vsyncpa [#allocation16], 1
    %2750 = vsyncpa [#allocation5], 1
    %s2751 = scalar_lea.sflag [#allocation5], 1
    %2752 = vsyncpa %s2751, 1
    %2753 = vsyncpa [#allocation19], 1
    %2754 = vsyncpa [#allocation22], 1

</llo_original>
